<compile_context>
chip_gen: v6e
topology: v6e:2x2x1
jax: 0.10.0
libtpu: 0.0.40
codegen_flags: <defaults>
</compile_context>

<pallas_src>
import functools

import jax
import jax.numpy as jnp
from jax import lax
from jax.experimental import pallas as pl
from jax.experimental.pallas import tpu as pltpu


def _self_attn_kernel(xf_ref, xt_ref, wq_ref, bq_ref, wk_ref, bk_ref, wv_ref,
                      bv_ref, gamma_ref, out_ref, attn_ref, k_sc, v_sc):
    t = pl.program_id(1)

    # Once per batch element (query-tile axis is innermost + "arbitrary"):
    # project keys/values for the full spatial extent into bf16 VMEM scratch.
    @pl.when(t == 0)
    def _():
        xb = xf_ref[0].astype(jnp.bfloat16)                                  # (C, N)
        k = jnp.dot(wk_ref[...].astype(jnp.bfloat16), xb,
                    preferred_element_type=jnp.float32) + bk_ref[...]        # (Cq, N) f32
        v = jnp.dot(wv_ref[...].astype(jnp.bfloat16), xb,
                    preferred_element_type=jnp.float32) + bv_ref[...]        # (C, N)  f32
        k_sc[...] = k.astype(jnp.bfloat16)
        v_sc[...] = v.astype(jnp.bfloat16)

    # Query projection for this (TQ-wide) query tile only.
    x_t = xt_ref[0]                                                          # (C, TQ) f32
    q_t = (jnp.dot(wq_ref[...].astype(jnp.bfloat16), x_t.astype(jnp.bfloat16),
                   preferred_element_type=jnp.float32) + bq_ref[...])        # (Cq, TQ) f32

    # energy[i, j] = sum_c q[c, i] * k[c, j]  -- contraction over channels,
    # expressed via dimension numbers (no explicit q transpose).
    energy = lax.dot_general(
        q_t.astype(jnp.bfloat16), k_sc[...],
        (((0,), (0,)), ((), ())),
        preferred_element_type=jnp.float32)                                  # (TQ, N) f32

    # Numerically-stable softmax over the key axis; statistics kept in f32.
    energy = energy - jnp.max(energy, axis=-1, keepdims=True)
    e = jnp.exp(energy)
    inv = pl.reciprocal(jnp.sum(e, axis=-1, keepdims=True), approx=True)
    attn = e * inv                                                           # (TQ, N) f32

    # out[c, i] = sum_j v[c, j] * attn[i, j]  -- rhs-transposed contraction,
    # no attn.T materialization.
    out = lax.dot_general(
        v_sc[...], attn.astype(jnp.bfloat16),
        (((1,), (1,)), ((), ())),
        preferred_element_type=jnp.float32)                                  # (C, TQ) f32

    gamma = gamma_ref[0, 0]
    out_ref[0] = (gamma * out + x_t).astype(out_ref.dtype)
    attn_ref[0] = attn.astype(attn_ref.dtype)


def _pick_tq(n):
    """Largest preferred query-tile width that divides N (256-multiples preferred)."""
    for tq in (256, 128):
        if n % tq == 0 and n > tq:
            return tq
    return n  # untiled fallback (block equals full dim, still legal)


@functools.partial(jax.jit, static_argnames=("tq", "attn_dtype"))
def self_attn_pallas(x, wq, bq, wk, bk, wv, bv, gamma, crop_h=None, crop_w=None,
                     *, tq=None, attn_dtype=jnp.float32):
    """x: (B, C, H, W) float32.  Returns (out (B, C, H, W), attention (B, N, N)).

    attn_dtype=jnp.bfloat16 halves the dominant HBM write if callers tolerate it;
    the default keeps the PyTorch fp32 output contract.
    """
    B, C, H, W = x.shape
    N = H * W
    Cq = wq.shape[0]
    TQ = tq if tq is not None else _pick_tq(N)
    assert N % TQ == 0, "query tile must divide N"
    NQ = N // TQ

    x_flat = x.reshape(B, C, N)
    bq2 = bq.reshape(Cq, 1)
    bk2 = bk.reshape(Cq, 1)
    bv2 = bv.reshape(C, 1)
    gamma2 = gamma.reshape(1, 1)

    # Explicit scoped-VMEM budget (double buffers + scratch + softmax temporaries),
    # clamped so it stays sane across v5e/v6e (128 MiB) and v7x (64 MiB) parts.
    attn_isz = jnp.dtype(attn_dtype).itemsize
    vmem_est = (C * N * 4                    # resident full-x block
                + 2 * C * TQ * 4             # x query-tile block (double-buffered)
                + 2 * C * TQ * 4             # out block
                + 2 * TQ * N * attn_isz      # attn block
                + (Cq + C) * N * 2           # bf16 k/v scratch
                + 4 * TQ * N * 4)            # softmax temporaries headroom
    vmem_limit = int(min(max(2 * vmem_est, 32 * 2 ** 20), 100 * 2 ** 20))

    out_flat, attn = pl.pallas_call(
        _self_attn_kernel,
        out_shape=(
            jax.ShapeDtypeStruct((B, C, N), x.dtype),
            jax.ShapeDtypeStruct((B, N, N), attn_dtype),
        ),
        grid=(B, NQ),
        in_specs=[
            pl.BlockSpec((1, C, N), lambda b, t: (b, 0, 0)),     # x (full, stays resident per b)
            pl.BlockSpec((1, C, TQ), lambda b, t: (b, 0, t)),    # x query tile
            pl.BlockSpec((Cq, C), lambda b, t: (0, 0)),          # Wq
            pl.BlockSpec((Cq, 1), lambda b, t: (0, 0)),          # bq
            pl.BlockSpec((Cq, C), lambda b, t: (0, 0)),          # Wk
            pl.BlockSpec((Cq, 1), lambda b, t: (0, 0)),          # bk
            pl.BlockSpec((C, C), lambda b, t: (0, 0)),           # Wv
            pl.BlockSpec((C, 1), lambda b, t: (0, 0)),           # bv
            pl.BlockSpec((1, 1), lambda b, t: (0, 0),
                         memory_space=pltpu.MemorySpace.SMEM),   # gamma
        ],
        out_specs=[
            pl.BlockSpec((1, C, TQ), lambda b, t: (b, 0, t)),
            pl.BlockSpec((1, TQ, N), lambda b, t: (b, t, 0)),
        ],
        scratch_shapes=[
            pltpu.VMEM((Cq, N), jnp.bfloat16),   # keys   (persist across query tiles)
            pltpu.VMEM((C, N), jnp.bfloat16),    # values (persist across query tiles)
        ],
        compiler_params=pltpu.CompilerParams(
            dimension_semantics=("parallel", "arbitrary"),
            vmem_limit_bytes=vmem_limit),
    )(x_flat, x_flat, wq, bq2, wk, bk2, wv, bv2, gamma2)

    return out_flat.reshape(B, C, H, W), attn


def _reference(x, wq, bq, wk, bk, wv, bv, gamma):
    """Pure-JAX reference mirroring the PyTorch forward (fp32)."""
    B, C, H, W = x.shape
    N = H * W
    xf = x.reshape(B, C, N)
    q = jnp.einsum("oc,bcn->bon", wq, xf) + bq[None, :, None]   # (B, Cq, N)
    k = jnp.einsum("oc,bcn->bon", wk, xf) + bk[None, :, None]   # (B, Cq, N)
    v = jnp.einsum("oc,bcn->bon", wv, xf) + bv[None, :, None]   # (B, C,  N)
    energy = jnp.einsum("bci,bcj->bij", q, k)                   # (B, N, N)
    attn = jax.nn.softmax(energy, axis=-1)
    out = jnp.einsum("bcj,bij->bci", v, attn)                   # (B, C, N)
    out = gamma[0] * out + xf
    return out.reshape(B, C, H, W), attn


if __name__ == "__main__":
    # Small shapes consistent with the module (in_dim >= 8 because of in_dim // 8).
    B, C, H, W = 2, 16, 16, 16        # N = 256 -> TQ = 128, two query tiles per batch
    Cq = C // 8

    key = jax.random.PRNGKey(0)
    kx, k1, k2, k3, k4, k5, k6 = jax.random.split(key, 7)

    x = jax.random.normal(kx, (B, C, H, W), dtype=jnp.float32)

    # 1x1 conv weights squeezed to (out, in).
    wq = 0.1 * jax.random.normal(k1, (Cq, C), dtype=jnp.float32)
    bq = 0.1 * jax.random.normal(k2, (Cq,), dtype=jnp.float32)
    wk = 0.1 * jax.random.normal(k3, (Cq, C), dtype=jnp.float32)
    bk = 0.1 * jax.random.normal(k4, (Cq,), dtype=jnp.float32)
    wv = 0.1 * jax.random.normal(k5, (C, C), dtype=jnp.float32)
    bv = 0.1 * jax.random.normal(k6, (C,), dtype=jnp.float32)
    # gamma is a learned scalar (initialized to 0 in the module); use a nonzero value
    # so the attention path of the residual is actually exercised.
    gamma = jnp.full((1,), 0.5, dtype=jnp.float32)

    out, attn = self_attn_pallas(x, wq, bq, wk, bk, wv, bv, gamma)
    out, attn = jax.block_until_ready((out, attn))

    out_ref, attn_ref = _reference(x, wq, bq, wk, bk, wv, bv, gamma)
    assert out.shape == (B, C, H, W) and attn.shape == (B, H * W, H * W)
    # bf16 MXU operands + approx reciprocal loosen agreement vs. the fp32 reference.
    assert jnp.allclose(out, out_ref, rtol=2e-2, atol=2e-2)
    assert jnp.allclose(attn, attn_ref, rtol=5e-2, atol=2e-3)

    print("KERNEL_OK")
</pallas_src>

<mosaic_0001>
module attributes {stable_mosaic.version = 11 : i64} {
  func.func @_self_attn_kernel(%arg0: i32, %arg1: i32, %arg2: memref<1x16x256xf32, #tpu.memory_space<vmem>>, %arg3: memref<1x16x128xf32, #tpu.memory_space<vmem>>, %arg4: memref<2x16xf32, #tpu.memory_space<vmem>>, %arg5: memref<2x1xf32, #tpu.memory_space<vmem>>, %arg6: memref<2x16xf32, #tpu.memory_space<vmem>>, %arg7: memref<2x1xf32, #tpu.memory_space<vmem>>, %arg8: memref<16x16xf32, #tpu.memory_space<vmem>>, %arg9: memref<16x1xf32, #tpu.memory_space<vmem>>, %arg10: memref<1x1xf32, #tpu.memory_space<smem>>, %arg11: memref<1x16x128xf32, #tpu.memory_space<vmem>>, %arg12: memref<1x128x256xf32, #tpu.memory_space<vmem>>, %arg13: memref<2x256xbf16, #tpu.memory_space<vmem>>, %arg14: memref<16x256xbf16, #tpu.memory_space<vmem>>) attributes {dimension_semantics = [#tpu.dimension_semantics<parallel>, #tpu.dimension_semantics<arbitrary>], iteration_bounds = array<i64: 2, 2>, scalar_prefetch = 0 : i64, scratch_operands = 2 : i64, tpu.core_type = #tpu.core_type<tc>, window_params = [{transform_indices = @transform_0, window_bounds = array<i64: 1, 16, 256>}, {transform_indices = @transform_1, window_bounds = array<i64: 1, 16, 128>}, {pipeline_mode = #tpu.pipeline_mode<synchronous>, transform_indices = @transform_2, window_bounds = array<i64: 2, 16>}, {pipeline_mode = #tpu.pipeline_mode<synchronous>, transform_indices = @transform_3, window_bounds = array<i64: 2, 1>}, {pipeline_mode = #tpu.pipeline_mode<synchronous>, transform_indices = @transform_4, window_bounds = array<i64: 2, 16>}, {pipeline_mode = #tpu.pipeline_mode<synchronous>, transform_indices = @transform_5, window_bounds = array<i64: 2, 1>}, {pipeline_mode = #tpu.pipeline_mode<synchronous>, transform_indices = @transform_6, window_bounds = array<i64: 16, 16>}, {pipeline_mode = #tpu.pipeline_mode<synchronous>, transform_indices = @transform_7, window_bounds = array<i64: 16, 1>}, {transform_indices = @transform_8, window_bounds = array<i64: 1, 1>}, {transform_indices = @transform_9, window_bounds = array<i64: 1, 16, 128>}, {transform_indices = @transform_10, window_bounds = array<i64: 1, 128, 256>}]} {
    %c0_i32 = arith.constant 0 : i32
    %0 = arith.cmpi eq, %arg1, %c0_i32 : i32
    %1 = arith.extui %0 : i1 to i32
    %c0_i32_0 = arith.constant 0 : i32
    %2 = arith.cmpi ne, %1, %c0_i32_0 : i32
    scf.if %2 {
      %c0_23 = arith.constant 0 : index
      %c0_24 = arith.constant 0 : index
      %c0_25 = arith.constant 0 : index
      %38 = vector.load %arg2[%c0_23, %c0_24, %c0_25] : memref<1x16x256xf32, #tpu.memory_space<vmem>>, vector<1x16x256xf32>
      %39 = vector.shape_cast %38 : vector<1x16x256xf32> to vector<16x256xf32>
      %40 = arith.truncf %39 : vector<16x256xf32> to vector<16x256xbf16>
      %c0_26 = arith.constant 0 : index
      %c0_27 = arith.constant 0 : index
      %41 = vector.load %arg6[%c0_26, %c0_27] : memref<2x16xf32, #tpu.memory_space<vmem>>, vector<2x16xf32>
      %42 = arith.truncf %41 : vector<2x16xf32> to vector<2x16xbf16>
      %cst_28 = arith.constant dense<0.000000e+00> : vector<2x256xf32>
      %43 = tpu.matmul %42, %40, %cst_28 {dimension_numbers = #tpu.dot_dimension_numbers<[1], [0], [0], [1], [0, 0, 1, 1], [], []>} : vector<2x16xbf16>, vector<16x256xbf16>, vector<2x256xf32> -> vector<2x256xf32>
      %c0_29 = arith.constant 0 : index
      %c0_30 = arith.constant 0 : index
      %44 = vector.load %arg7[%c0_29, %c0_30] : memref<2x1xf32, #tpu.memory_space<vmem>>, vector<2x1xf32>
      %45 = vector.broadcast %44 : vector<2x1xf32> to vector<2x256xf32>
      %46 = arith.addf %43, %45 : vector<2x256xf32>
      %c0_31 = arith.constant 0 : index
      %c0_32 = arith.constant 0 : index
      %47 = vector.load %arg8[%c0_31, %c0_32] : memref<16x16xf32, #tpu.memory_space<vmem>>, vector<16x16xf32>
      %48 = arith.truncf %47 : vector<16x16xf32> to vector<16x16xbf16>
      %cst_33 = arith.constant dense<0.000000e+00> : vector<16x256xf32>
      %49 = tpu.matmul %48, %40, %cst_33 {dimension_numbers = #tpu.dot_dimension_numbers<[1], [0], [0], [1], [0, 0, 1, 1], [], []>} : vector<16x16xbf16>, vector<16x256xbf16>, vector<16x256xf32> -> vector<16x256xf32>
      %c0_34 = arith.constant 0 : index
      %c0_35 = arith.constant 0 : index
      %50 = vector.load %arg9[%c0_34, %c0_35] : memref<16x1xf32, #tpu.memory_space<vmem>>, vector<16x1xf32>
      %51 = vector.broadcast %50 : vector<16x1xf32> to vector<16x256xf32>
      %52 = arith.addf %49, %51 : vector<16x256xf32>
      %53 = arith.truncf %46 : vector<2x256xf32> to vector<2x256xbf16>
      %c0_36 = arith.constant 0 : index
      %c0_37 = arith.constant 0 : index
      %54 = vector.load %arg13[%c0_36, %c0_37] : memref<2x256xbf16, #tpu.memory_space<vmem>>, vector<2x256xbf16>
      tpu.vector_store %arg13[%c0_36, %c0_37], %53 {strides = array<i32>} : memref<2x256xbf16, #tpu.memory_space<vmem>>, vector<2x256xbf16>,
      %55 = arith.truncf %52 : vector<16x256xf32> to vector<16x256xbf16>
      %c0_38 = arith.constant 0 : index
      %c0_39 = arith.constant 0 : index
      %56 = vector.load %arg14[%c0_38, %c0_39] : memref<16x256xbf16, #tpu.memory_space<vmem>>, vector<16x256xbf16>
      tpu.vector_store %arg14[%c0_38, %c0_39], %55 {strides = array<i32>} : memref<16x256xbf16, #tpu.memory_space<vmem>>, vector<16x256xbf16>,
    } else {
    }
    %c0 = arith.constant 0 : index
    %c0_1 = arith.constant 0 : index
    %c0_2 = arith.constant 0 : index
    %3 = vector.load %arg3[%c0, %c0_1, %c0_2] : memref<1x16x128xf32, #tpu.memory_space<vmem>>, vector<1x16x128xf32>
    %4 = vector.shape_cast %3 : vector<1x16x128xf32> to vector<16x128xf32>
    %c0_3 = arith.constant 0 : index
    %c0_4 = arith.constant 0 : index
    %5 = vector.load %arg4[%c0_3, %c0_4] : memref<2x16xf32, #tpu.memory_space<vmem>>, vector<2x16xf32>
    %6 = arith.truncf %5 : vector<2x16xf32> to vector<2x16xbf16>
    %7 = arith.truncf %4 : vector<16x128xf32> to vector<16x128xbf16>
    %cst = arith.constant dense<0.000000e+00> : vector<2x128xf32>
    %8 = tpu.matmul %6, %7, %cst {dimension_numbers = #tpu.dot_dimension_numbers<[1], [0], [0], [1], [0, 0, 1, 1], [], []>} : vector<2x16xbf16>, vector<16x128xbf16>, vector<2x128xf32> -> vector<2x128xf32>
    %c0_5 = arith.constant 0 : index
    %c0_6 = arith.constant 0 : index
    %9 = vector.load %arg5[%c0_5, %c0_6] : memref<2x1xf32, #tpu.memory_space<vmem>>, vector<2x1xf32>
    %10 = vector.broadcast %9 : vector<2x1xf32> to vector<2x128xf32>
    %11 = arith.addf %8, %10 : vector<2x128xf32>
    %12 = arith.truncf %11 : vector<2x128xf32> to vector<2x128xbf16>
    %c0_7 = arith.constant 0 : index
    %c0_8 = arith.constant 0 : index
    %13 = vector.load %arg13[%c0_7, %c0_8] : memref<2x256xbf16, #tpu.memory_space<vmem>>, vector<2x256xbf16>
    %cst_9 = arith.constant dense<0.000000e+00> : vector<128x256xf32>
    %14 = tpu.matmul %12, %13, %cst_9 {dimension_numbers = #tpu.dot_dimension_numbers<[0], [0], [1], [1], [0, 1, 1, 1], [], []>} : vector<2x128xbf16>, vector<2x256xbf16>, vector<128x256xf32> -> vector<128x256xf32>
    %cst_10 = arith.constant dense<0xFF800000> : vector<128xf32>
    %15 = vector.multi_reduction <maximumf>, %14, %cst_10 [1] : vector<128x256xf32> to vector<128xf32>
    %16 = vector.shape_cast %15 : vector<128xf32> to vector<128x1xf32>
    %17 = vector.broadcast %16 : vector<128x1xf32> to vector<128x256xf32>
    %18 = arith.subf %14, %17 : vector<128x256xf32>
    %19 = math.exp %18 : vector<128x256xf32>
    %cst_11 = arith.constant dense<0.000000e+00> : vector<128xf32>
    %20 = vector.multi_reduction <add>, %19, %cst_11 [1] : vector<128x256xf32> to vector<128xf32>
    %21 = vector.shape_cast %20 : vector<128xf32> to vector<128x1xf32>
    %22 = tpu.reciprocal %21 {approx = true} : vector<128x1xf32> -> vector<128x1xf32>
    %23 = vector.broadcast %22 : vector<128x1xf32> to vector<128x256xf32>
    %24 = arith.mulf %19, %23 : vector<128x256xf32>
    %c0_12 = arith.constant 0 : index
    %c0_13 = arith.constant 0 : index
    %25 = vector.load %arg14[%c0_12, %c0_13] : memref<16x256xbf16, #tpu.memory_space<vmem>>, vector<16x256xbf16>
    %26 = arith.truncf %24 : vector<128x256xf32> to vector<128x256xbf16>
    %cst_14 = arith.constant dense<0.000000e+00> : vector<16x128xf32>
    %27 = tpu.matmul %25, %26, %cst_14 {dimension_numbers = #tpu.dot_dimension_numbers<[1], [1], [0], [0], [0, 0, 1, 0], [], []>} : vector<16x256xbf16>, vector<128x256xbf16>, vector<16x128xf32> -> vector<16x128xf32>
    %c0_15 = arith.constant 0 : index
    %c0_16 = arith.constant 0 : index
    %28 = memref.load %arg10[%c0_15, %c0_16] : memref<1x1xf32, #tpu.memory_space<smem>>
    %29 = vector.broadcast %28 : f32 to vector<16x128xf32>
    %30 = arith.mulf %29, %27 : vector<16x128xf32>
    %31 = arith.addf %30, %4 : vector<16x128xf32>
    %c0_17 = arith.constant 0 : index
    %c0_18 = arith.constant 0 : index
    %c0_19 = arith.constant 0 : index
    %32 = vector.load %arg11[%c0_17, %c0_18, %c0_19] : memref<1x16x128xf32, #tpu.memory_space<vmem>>, vector<1x16x128xf32>
    %33 = vector.shape_cast %32 : vector<1x16x128xf32> to vector<16x128xf32>
    %34 = vector.shape_cast %31 : vector<16x128xf32> to vector<1x16x128xf32>
    tpu.vector_store %arg11[%c0_17, %c0_18, %c0_19], %34 {strides = array<i32>} : memref<1x16x128xf32, #tpu.memory_space<vmem>>, vector<1x16x128xf32>,
    %c0_20 = arith.constant 0 : index
    %c0_21 = arith.constant 0 : index
    %c0_22 = arith.constant 0 : index
    %35 = vector.load %arg12[%c0_20, %c0_21, %c0_22] : memref<1x128x256xf32, #tpu.memory_space<vmem>>, vector<1x128x256xf32>
    %36 = vector.shape_cast %35 : vector<1x128x256xf32> to vector<128x256xf32>
    %37 = vector.shape_cast %24 : vector<128x256xf32> to vector<1x128x256xf32>
    tpu.vector_store %arg12[%c0_20, %c0_21, %c0_22], %37 {strides = array<i32>} : memref<1x128x256xf32, #tpu.memory_space<vmem>>, vector<1x128x256xf32>,
    return
  }
  func.func @transform_0(%arg0: i32, %arg1: i32) -> (i32, i32, i32) {
    %c0_i32 = arith.constant 0 : i32
    %c0_i32_0 = arith.constant 0 : i32
    %c0_i32_1 = arith.constant 0 : i32
    return %arg0, %c0_i32, %c0_i32_0 : i32, i32, i32
  }
  func.func @transform_1(%arg0: i32, %arg1: i32) -> (i32, i32, i32) {
    %c0_i32 = arith.constant 0 : i32
    %c0_i32_0 = arith.constant 0 : i32
    return %arg0, %c0_i32, %arg1 : i32, i32, i32
  }
  func.func @transform_2(%arg0: i32, %arg1: i32) -> (i32, i32) {
    %c0_i32 = arith.constant 0 : i32
    %c0_i32_0 = arith.constant 0 : i32
    %c0_i32_1 = arith.constant 0 : i32
    return %c0_i32, %c0_i32_0 : i32, i32
  }
  func.func @transform_3(%arg0: i32, %arg1: i32) -> (i32, i32) {
    %c0_i32 = arith.constant 0 : i32
    %c0_i32_0 = arith.constant 0 : i32
    %c0_i32_1 = arith.constant 0 : i32
    return %c0_i32, %c0_i32_0 : i32, i32
  }
  func.func @transform_4(%arg0: i32, %arg1: i32) -> (i32, i32) {
    %c0_i32 = arith.constant 0 : i32
    %c0_i32_0 = arith.constant 0 : i32
    %c0_i32_1 = arith.constant 0 : i32
    return %c0_i32, %c0_i32_0 : i32, i32
  }
  func.func @transform_5(%arg0: i32, %arg1: i32) -> (i32, i32) {
    %c0_i32 = arith.constant 0 : i32
    %c0_i32_0 = arith.constant 0 : i32
    %c0_i32_1 = arith.constant 0 : i32
    return %c0_i32, %c0_i32_0 : i32, i32
  }
  func.func @transform_6(%arg0: i32, %arg1: i32) -> (i32, i32) {
    %c0_i32 = arith.constant 0 : i32
    %c0_i32_0 = arith.constant 0 : i32
    %c0_i32_1 = arith.constant 0 : i32
    return %c0_i32, %c0_i32_0 : i32, i32
  }
  func.func @transform_7(%arg0: i32, %arg1: i32) -> (i32, i32) {
    %c0_i32 = arith.constant 0 : i32
    %c0_i32_0 = arith.constant 0 : i32
    %c0_i32_1 = arith.constant 0 : i32
    return %c0_i32, %c0_i32_0 : i32, i32
  }
  func.func @transform_8(%arg0: i32, %arg1: i32) -> (i32, i32) {
    %c0_i32 = arith.constant 0 : i32
    %c0_i32_0 = arith.constant 0 : i32
    %c0_i32_1 = arith.constant 0 : i32
    return %c0_i32, %c0_i32_0 : i32, i32
  }
  func.func @transform_9(%arg0: i32, %arg1: i32) -> (i32, i32, i32) {
    %c0_i32 = arith.constant 0 : i32
    %c0_i32_0 = arith.constant 0 : i32
    return %arg0, %c0_i32, %arg1 : i32, i32, i32
  }
  func.func @transform_10(%arg0: i32, %arg1: i32) -> (i32, i32, i32) {
    %c0_i32 = arith.constant 0 : i32
    %c0_i32_0 = arith.constant 0 : i32
    return %arg0, %arg1, %c0_i32 : i32, i32, i32
  }
}

</mosaic_0001>

<llo_original>
// kernel: self_attn_pallas.1
$region0: #{self_attn_pallas.1}
  #allocation0 [shape = 'u32[]', space=smem, size = 0x4, offset = 0x4, fixed_abs, tag = 'smem constant byte address 0x4 - core index']
  #allocation1 [shape = 'u32[144,128]{1,0:T(1,128)}', space=vmem, size = 0x12000, scoped, tag = 'internal scratch']
  #allocation2 [shape = 'bf16[2,256]{1,0:T(2,128)(2,1)}', space=vmem, size = 0x400, scoped, tag = 'scratch operand']
  #allocation3 [shape = 'bf16[16,256]{1,0:T(8,128)(2,1)}', space=vmem, size = 0x2000, scoped, tag = 'scratch operand']
  #allocation4 [shape = 'f32[1,1]{1,0:T(1,128)S(6)}', space=smem, size = 0x200, scoped, tag = 'scoped memory for self_attn_pallas.1']
  %s0 = inlined_call_operand.vmem [shape: f32[2,16,256], index: 0, kind: input, shape index: {}, may-alias: {0,1}]
  %s1 = inlined_call_operand.vmem [shape: f32[2,16,256], index: 1, kind: input, shape index: {}, may-alias: {0,1}]
  %s2 = inlined_call_operand.vmem [shape: f32[2,16], index: 2, kind: input, shape index: {}]
  %s3 = inlined_call_operand.vmem [shape: f32[2,1], index: 3, kind: input, shape index: {}]
  %s4 = inlined_call_operand.vmem [shape: f32[2,16], index: 4, kind: input, shape index: {}]
  %s5 = inlined_call_operand.vmem [shape: f32[2,1], index: 5, kind: input, shape index: {}]
  %s6 = inlined_call_operand.vmem [shape: f32[16,16], index: 6, kind: input, shape index: {}]
  %s7 = inlined_call_operand.vmem [shape: f32[16,1], index: 7, kind: input, shape index: {}]
  %s8 = inlined_call_operand.<no memory space> [shape: f32[1,1], index: 8, kind: input, shape index: {}]
  %s9 = inlined_call_operand.vmem [shape: f32[2,16,256], index: 9, kind: output, shape index: {0}]
  %s10 = inlined_call_operand.hbm [shape: f32[2,256,256], index: 10, kind: output, shape index: {1}]
  %11 = xla_tuple %s9, %s10
  %s12 = sld [smem:[#allocation0]]
  $region153: #{self_attn_pallas.1} parent=0
    _
  %s14 = ssub.s32 1, %s12
  %s15 = scalar_select 0, %s14, %s12
  %16 = sst [smem:[#allocation4]] %s8
  $region1: #{self_attn_pallas.1} parent=0
    #allocation5 [shape = 'u8[16384]{0}', space=vmem, size = 0x4000, scoped, tag = 'input window, operand 1']
    #allocation6 [shape = 'u8[16384]{0}', space=vmem, size = 0x4000, scoped, tag = 'output window, operand 0']
    #allocation7 [shape = 'u8[262144]{0}', space=vmem, size = 0x40000, scoped, tag = 'output window, operand 1']
    #allocation8 [shape = 's32[2]{0}', space=sflag, size = 0x8, scoped, tag = 'scoped memory for self_attn_pallas.1']
    %17 = vsyncpa [#allocation8], 0
    %s18 = scalar_lea.sflag [#allocation8], 1
    %19 = vsyncpa %s18, 0
    loop: start=0, step=1, limit=6
    $region2: #{self_attn_pallas.1} parent=1 // loop_pre_header
      _
    $region3: #{self_attn_pallas.1} parent=1 // loop_header
      %s21 = sphi 0, %s25
      %p22 = scmp.ge.s32.totalorder %s21, 6
      %s28 = sphi 0, %s40
      %s29 = sphi 0, %s36
      %s30 = sphi 0, %s28
      %s31 = sphi 0, %s29
      %s32 = sphi 0, %s30
      %s33 = sphi 0, %s31
      %s43 = sphi 0, %s45
      %s46 = sphi 0, %s43
      %s47 = sphi 0, %s46
      %s63 = sphi 0, %s47
      %s71 = sphi 0, %s73
      %s74 = sphi 0, %s71
      %s75 = sphi 0, %s74
      %s91 = sphi 0, %s75
      %s95 = sphi 0, %s95
      %s97 = sphi 0, %s95
      %s98 = sphi 0, %s97
      %s112 = sphi 0, %s98
      %s116 = sphi 0, %s116
      %s118 = sphi 0, %s116
      %s119 = sphi 0, %s118
      %s133 = sphi 0, %s119
      %s137 = sphi 0, %s137
      %s139 = sphi 0, %s137
      %s140 = sphi 0, %s139
      %s154 = sphi 0, %s140
      %s158 = sphi 0, %s158
      %s160 = sphi 0, %s158
      %s161 = sphi 0, %s160
      %s175 = sphi 0, %s161
      %s179 = sphi 0, %s179
      %s181 = sphi 0, %s179
      %s182 = sphi 0, %s181
      %s196 = sphi 0, %s182
      %s200 = sphi 0, %s200
      %s202 = sphi 0, %s200
      %s203 = sphi 0, %s202
      %s217 = sphi 0, %s203
      %s221 = sphi 0, %s221
      %s223 = sphi 0, %s221
      %s224 = sphi 0, %s223
      %s238 = sphi 0, %s224
      %s246 = sphi 0, %s248
      %s249 = sphi 0, %s246
      %s250 = sphi 0, %s249
      %s266 = sphi 0, %s250
      %s274 = sphi 0, %s276
      %s277 = sphi 0, %s274
      %s278 = sphi 0, %s277
      %s294 = sphi 0, %s278
    $region4: #{self_attn_pallas.1} parent=1 // loop_header_branch
      %24 = sbr.rel (%p22) target = $region8
    $region5: #{self_attn_pallas.1} parent=1 // loop_body
      %s26 = ssub.s32 %s21, 1
      %s27 = ssub.s32 %s21, 2
      %s34 = sadd.s32 1, %s29
      %p35 = scmp.ge.s32.totalorder %s34, 2
      %s36 = scalar_select %p35, 0, %s34
      %s37 = sadd.s32 1, %s28
      %s38 = scalar_select %p35, %s37, %s28
      %p39 = scmp.ge.s32.totalorder %s38, 2
      %s40 = scalar_select %p39, 0, %s38
      %s41 = ssub.s32 %s28, %s40
      %p42 = scmp.eq.s32.totalorder %s41, 0
      %s44 = sadd.s32 %s43, 1
      %s45 = scalar_select %p42, %s43, %s44
      %p48 = pneg %p42
      %p49 = scmp.eq.s32.totalorder %s21, 3
      %p50 = por %p48, %p49
      %p51 = scmp.ne.s32.totalorder %s43, %s46
      %p52 = scmp.eq.s32.totalorder %s21, 0
      %p53 = por %p51, %p52
      %p54 = scmp.ne.s32.totalorder %s43, %s46
      %p55 = scmp.eq.s32.totalorder %s26, 3
      %p56 = por %p54, %p55
      %p57 = scmp.ne.s32.totalorder %s46, %s47
      %p58 = scmp.eq.s32.totalorder %s26, 0
      %p59 = por %p57, %p58
      %p60 = scmp.ne.s32.totalorder %s46, %s47
      %p61 = scmp.eq.s32.totalorder %s27, 3
      %p62 = por %p60, %p61
      %p64 = scmp.ne.s32.totalorder %s47, %s63
      %p65 = scmp.eq.s32.totalorder %s27, 0
      %p66 = por %p64, %p65
      %s67 = ssub.s32 %s28, %s40
      %s68 = ssub.s32 %s29, %s36
      %s69 = sor.u32 %s67, %s68
      %p70 = scmp.eq.s32.totalorder %s69, 0
      %s72 = sadd.s32 %s71, 1
      %s73 = scalar_select %p70, %s71, %s72
      %p76 = pneg %p70
      %p77 = scmp.eq.s32.totalorder %s21, 3
      %p78 = por %p76, %p77
      %p79 = scmp.ne.s32.totalorder %s71, %s74
      %p80 = scmp.eq.s32.totalorder %s21, 0
      %p81 = por %p79, %p80
      %p82 = scmp.ne.s32.totalorder %s71, %s74
      %p83 = scmp.eq.s32.totalorder %s26, 3
      %p84 = por %p82, %p83
      %p85 = scmp.ne.s32.totalorder %s74, %s75
      %p86 = scmp.eq.s32.totalorder %s26, 0
      %p87 = por %p85, %p86
      %p88 = scmp.ne.s32.totalorder %s74, %s75
      %p89 = scmp.eq.s32.totalorder %s27, 3
      %p90 = por %p88, %p89
      %p92 = scmp.ne.s32.totalorder %s75, %s91
      %p93 = scmp.eq.s32.totalorder %s27, 0
      %p94 = por %p92, %p93
      %s96 = sadd.s32 %s95, 1
      %p99 = scmp.eq.s32.totalorder %s21, 3
      %p100 = scmp.ne.s32.totalorder %s95, %s97
      %p101 = scmp.eq.s32.totalorder %s21, 0
      %p102 = por %p100, %p101
      %p103 = scmp.ne.s32.totalorder %s95, %s97
      %p104 = scmp.eq.s32.totalorder %s26, 3
      %p105 = por %p103, %p104
      %p106 = scmp.ne.s32.totalorder %s97, %s98
      %p107 = scmp.eq.s32.totalorder %s26, 0
      %p108 = por %p106, %p107
      %p109 = scmp.ne.s32.totalorder %s97, %s98
      %p110 = scmp.eq.s32.totalorder %s27, 3
      %p111 = por %p109, %p110
      %p113 = scmp.ne.s32.totalorder %s98, %s112
      %p114 = scmp.eq.s32.totalorder %s27, 0
      %p115 = por %p113, %p114
      %s117 = sadd.s32 %s116, 1
      %p120 = scmp.eq.s32.totalorder %s21, 3
      %p121 = scmp.ne.s32.totalorder %s116, %s118
      %p122 = scmp.eq.s32.totalorder %s21, 0
      %p123 = por %p121, %p122
      %p124 = scmp.ne.s32.totalorder %s116, %s118
      %p125 = scmp.eq.s32.totalorder %s26, 3
      %p126 = por %p124, %p125
      %p127 = scmp.ne.s32.totalorder %s118, %s119
      %p128 = scmp.eq.s32.totalorder %s26, 0
      %p129 = por %p127, %p128
      %p130 = scmp.ne.s32.totalorder %s118, %s119
      %p131 = scmp.eq.s32.totalorder %s27, 3
      %p132 = por %p130, %p131
      %p134 = scmp.ne.s32.totalorder %s119, %s133
      %p135 = scmp.eq.s32.totalorder %s27, 0
      %p136 = por %p134, %p135
      %s138 = sadd.s32 %s137, 1
      %p141 = scmp.eq.s32.totalorder %s21, 3
      %p142 = scmp.ne.s32.totalorder %s137, %s139
      %p143 = scmp.eq.s32.totalorder %s21, 0
      %p144 = por %p142, %p143
      %p145 = scmp.ne.s32.totalorder %s137, %s139
      %p146 = scmp.eq.s32.totalorder %s26, 3
      %p147 = por %p145, %p146
      %p148 = scmp.ne.s32.totalorder %s139, %s140
      %p149 = scmp.eq.s32.totalorder %s26, 0
      %p150 = por %p148, %p149
      %p151 = scmp.ne.s32.totalorder %s139, %s140
      %p152 = scmp.eq.s32.totalorder %s27, 3
      %p153 = por %p151, %p152
      %p155 = scmp.ne.s32.totalorder %s140, %s154
      %p156 = scmp.eq.s32.totalorder %s27, 0
      %p157 = por %p155, %p156
      %s159 = sadd.s32 %s158, 1
      %p162 = scmp.eq.s32.totalorder %s21, 3
      %p163 = scmp.ne.s32.totalorder %s158, %s160
      %p164 = scmp.eq.s32.totalorder %s21, 0
      %p165 = por %p163, %p164
      %p166 = scmp.ne.s32.totalorder %s158, %s160
      %p167 = scmp.eq.s32.totalorder %s26, 3
      %p168 = por %p166, %p167
      %p169 = scmp.ne.s32.totalorder %s160, %s161
      %p170 = scmp.eq.s32.totalorder %s26, 0
      %p171 = por %p169, %p170
      %p172 = scmp.ne.s32.totalorder %s160, %s161
      %p173 = scmp.eq.s32.totalorder %s27, 3
      %p174 = por %p172, %p173
      %p176 = scmp.ne.s32.totalorder %s161, %s175
      %p177 = scmp.eq.s32.totalorder %s27, 0
      %p178 = por %p176, %p177
      %s180 = sadd.s32 %s179, 1
      %p183 = scmp.eq.s32.totalorder %s21, 3
      %p184 = scmp.ne.s32.totalorder %s179, %s181
      %p185 = scmp.eq.s32.totalorder %s21, 0
      %p186 = por %p184, %p185
      %p187 = scmp.ne.s32.totalorder %s179, %s181
      %p188 = scmp.eq.s32.totalorder %s26, 3
      %p189 = por %p187, %p188
      %p190 = scmp.ne.s32.totalorder %s181, %s182
      %p191 = scmp.eq.s32.totalorder %s26, 0
      %p192 = por %p190, %p191
      %p193 = scmp.ne.s32.totalorder %s181, %s182
      %p194 = scmp.eq.s32.totalorder %s27, 3
      %p195 = por %p193, %p194
      %p197 = scmp.ne.s32.totalorder %s182, %s196
      %p198 = scmp.eq.s32.totalorder %s27, 0
      %p199 = por %p197, %p198
      %s201 = sadd.s32 %s200, 1
      %p204 = scmp.eq.s32.totalorder %s21, 3
      %p205 = scmp.ne.s32.totalorder %s200, %s202
      %p206 = scmp.eq.s32.totalorder %s21, 0
      %p207 = por %p205, %p206
      %p208 = scmp.ne.s32.totalorder %s200, %s202
      %p209 = scmp.eq.s32.totalorder %s26, 3
      %p210 = por %p208, %p209
      %p211 = scmp.ne.s32.totalorder %s202, %s203
      %p212 = scmp.eq.s32.totalorder %s26, 0
      %p213 = por %p211, %p212
      %p214 = scmp.ne.s32.totalorder %s202, %s203
      %p215 = scmp.eq.s32.totalorder %s27, 3
      %p216 = por %p214, %p215
      %p218 = scmp.ne.s32.totalorder %s203, %s217
      %p219 = scmp.eq.s32.totalorder %s27, 0
      %p220 = por %p218, %p219
      %s222 = sadd.s32 %s221, 1
      %p225 = scmp.eq.s32.totalorder %s21, 3
      %p226 = scmp.ne.s32.totalorder %s221, %s223
      %p227 = scmp.eq.s32.totalorder %s21, 0
      %p228 = por %p226, %p227
      %p229 = scmp.ne.s32.totalorder %s221, %s223
      %p230 = scmp.eq.s32.totalorder %s26, 3
      %p231 = por %p229, %p230
      %p232 = scmp.ne.s32.totalorder %s223, %s224
      %p233 = scmp.eq.s32.totalorder %s26, 0
      %p234 = por %p232, %p233
      %p235 = scmp.ne.s32.totalorder %s223, %s224
      %p236 = scmp.eq.s32.totalorder %s27, 3
      %p237 = por %p235, %p236
      %p239 = scmp.ne.s32.totalorder %s224, %s238
      %p240 = scmp.eq.s32.totalorder %s27, 0
      %p241 = por %p239, %p240
      %s242 = ssub.s32 %s28, %s40
      %s243 = ssub.s32 %s29, %s36
      %s244 = sor.u32 %s242, %s243
      %p245 = scmp.eq.s32.totalorder %s244, 0
      %s247 = sadd.s32 %s246, 1
      %s248 = scalar_select %p245, %s246, %s247
      %p251 = pneg %p245
      %p252 = scmp.eq.s32.totalorder %s21, 3
      %p253 = por %p251, %p252
      %p254 = scmp.ne.s32.totalorder %s246, %s249
      %p255 = scmp.eq.s32.totalorder %s21, 0
      %p256 = por %p254, %p255
      %p257 = scmp.ne.s32.totalorder %s246, %s249
      %p258 = scmp.eq.s32.totalorder %s26, 3
      %p259 = por %p257, %p258
      %p260 = scmp.ne.s32.totalorder %s249, %s250
      %p261 = scmp.eq.s32.totalorder %s26, 0
      %p262 = por %p260, %p261
      %p263 = scmp.ne.s32.totalorder %s249, %s250
      %p264 = scmp.eq.s32.totalorder %s27, 3
      %p265 = por %p263, %p264
      %p267 = scmp.ne.s32.totalorder %s250, %s266
      %p268 = scmp.eq.s32.totalorder %s27, 0
      %p269 = por %p267, %p268
      %s270 = ssub.s32 %s28, %s40
      %s271 = ssub.s32 %s29, %s36
      %s272 = sor.u32 %s270, %s271
      %p273 = scmp.eq.s32.totalorder %s272, 0
      %s275 = sadd.s32 %s274, 1
      %s276 = scalar_select %p273, %s274, %s275
      %p279 = pneg %p273
      %p280 = scmp.eq.s32.totalorder %s21, 3
      %p281 = por %p279, %p280
      %p282 = scmp.ne.s32.totalorder %s274, %s277
      %p283 = scmp.eq.s32.totalorder %s21, 0
      %p284 = por %p282, %p283
      %p285 = scmp.ne.s32.totalorder %s274, %s277
      %p286 = scmp.eq.s32.totalorder %s26, 3
      %p287 = por %p285, %p286
      %p288 = scmp.ne.s32.totalorder %s277, %s278
      %p289 = scmp.eq.s32.totalorder %s26, 0
      %p290 = por %p288, %p289
      %p291 = scmp.ne.s32.totalorder %s277, %s278
      %p292 = scmp.eq.s32.totalorder %s27, 3
      %p293 = por %p291, %p292
      %p295 = scmp.ne.s32.totalorder %s278, %s294
      %p296 = scmp.eq.s32.totalorder %s27, 0
      %p297 = por %p295, %p296
      %p298 = scmp.le.s32.totalorder 1, %s21
      %p299 = scmp.lt.s32.totalorder %s21, 5
      %p300 = pnand %p298, %p299
      %p301 = pneg %p300
      // Predicated region
      $region9: #{self_attn_pallas.1} parent=5 // pred_check
        _
      $region10: #{self_attn_pallas.1} parent=5 // pred_check_branch
        %303 = sbr.rel (%p300) target = $region12
      $region11: #{self_attn_pallas.1} parent=5 // pred_region
        %s304 = ssub.s32 %s21, 1
        // Predicated region
        $region13: #{self_attn_pallas.1} parent=11 // pred_check
          %p305 = pneg %p108
        $region14: #{self_attn_pallas.1} parent=11 // pred_check_branch
          %307 = sbr.rel (%p305) target = $region16
        $region15: #{self_attn_pallas.1} parent=11 // pred_region
          _
        $region16: #{self_attn_pallas.1} parent=11 // pred_fallthru
          _
        // Predicated region
        $region17: #{self_attn_pallas.1} parent=11 // pred_check
          %p308 = pneg %p129
        $region18: #{self_attn_pallas.1} parent=11 // pred_check_branch
          %310 = sbr.rel (%p308) target = $region20
        $region19: #{self_attn_pallas.1} parent=11 // pred_region
          _
        $region20: #{self_attn_pallas.1} parent=11 // pred_fallthru
          _
        // Predicated region
        $region21: #{self_attn_pallas.1} parent=11 // pred_check
          %p311 = pneg %p150
        $region22: #{self_attn_pallas.1} parent=11 // pred_check_branch
          %313 = sbr.rel (%p311) target = $region24
        $region23: #{self_attn_pallas.1} parent=11 // pred_region
          _
        $region24: #{self_attn_pallas.1} parent=11 // pred_fallthru
          _
        // Predicated region
        $region25: #{self_attn_pallas.1} parent=11 // pred_check
          %p314 = pneg %p171
        $region26: #{self_attn_pallas.1} parent=11 // pred_check_branch
          %316 = sbr.rel (%p314) target = $region28
        $region27: #{self_attn_pallas.1} parent=11 // pred_region
          _
        $region28: #{self_attn_pallas.1} parent=11 // pred_fallthru
          _
        // Predicated region
        $region29: #{self_attn_pallas.1} parent=11 // pred_check
          %p317 = pneg %p192
        $region30: #{self_attn_pallas.1} parent=11 // pred_check_branch
          %319 = sbr.rel (%p317) target = $region32
        $region31: #{self_attn_pallas.1} parent=11 // pred_region
          _
        $region32: #{self_attn_pallas.1} parent=11 // pred_fallthru
          _
        // Predicated region
        $region33: #{self_attn_pallas.1} parent=11 // pred_check
          %p320 = pneg %p213
        $region34: #{self_attn_pallas.1} parent=11 // pred_check_branch
          %322 = sbr.rel (%p320) target = $region36
        $region35: #{self_attn_pallas.1} parent=11 // pred_region
          _
        $region36: #{self_attn_pallas.1} parent=11 // pred_fallthru
          _
        // Predicated region
        $region37: #{self_attn_pallas.1} parent=11 // pred_check
          %p323 = pneg %p234
        $region38: #{self_attn_pallas.1} parent=11 // pred_check_branch
          %325 = sbr.rel (%p323) target = $region40
        $region39: #{self_attn_pallas.1} parent=11 // pred_region
          _
        $region40: #{self_attn_pallas.1} parent=11 // pred_fallthru
          _
      $region12: #{self_attn_pallas.1} parent=5 // pred_fallthru
        _
      %p326 = scmp.lt.s32.totalorder %s21, 4
      // Predicated region
      $region41: #{self_attn_pallas.1} parent=5 // pred_check
        %p327 = pneg %p326
      $region42: #{self_attn_pallas.1} parent=5 // pred_check_branch
        %329 = sbr.rel (%p327) target = $region44
      $region43: #{self_attn_pallas.1} parent=5 // pred_region
        // Predicated region
        $region45: #{self_attn_pallas.1} parent=43 // pred_check
          %p330 = pneg %p53
        $region46: #{self_attn_pallas.1} parent=43 // pred_check_branch
          %332 = sbr.rel (%p330) target = $region48
        $region47: #{self_attn_pallas.1} parent=43 // pred_region
          %p333 = scmp.lt.s32.totalorder %s28, 1
          %s334 = scalar_select %p333, %s28, 1
          %s335 = smul.addr %s334, 4
          %s336 = smul.addr %s335, 8
          %s337 = scalar_lea.vmem %s0, %s336
        $region48: #{self_attn_pallas.1} parent=43 // pred_fallthru
          _
        // Predicated region
        $region49: #{self_attn_pallas.1} parent=43 // pred_check
          %p338 = pneg %p81
        $region50: #{self_attn_pallas.1} parent=43 // pred_check_branch
          %340 = sbr.rel (%p338) target = $region52
        $region51: #{self_attn_pallas.1} parent=43 // pred_region
          %s341 = sand.u32 %s71, 1
          %s342 = sand.u32 %s71, 1
          %s343 = smul.addr %s342, 16
          %s344 = scalar_lea.vmem [#allocation5], %s343
          %s345 = smul.addr %s28, 4
          %s346 = sadd.s32 %s29, %s345
          %s347 = smul.addr %s346, 8
          %s348 = scalar_lea.vmem %s1, %s347
          // Predicated region
          $region53: #{self_attn_pallas.1} parent=51 // pred_check
            _
          $region54: #{self_attn_pallas.1} parent=51 // pred_check_branch
            %350 = sbr.rel (0) target = $region56
          $region55: #{self_attn_pallas.1} parent=51 // pred_region
            // Predicated region
            $region57: #{self_attn_pallas.1} parent=55 // pred_check
              _
            $region58: #{self_attn_pallas.1} parent=55 // pred_check_branch
              %352 = sbr.rel (0) target = $region60
            $region59: #{self_attn_pallas.1} parent=55 // pred_region
              // Predicated region
              $region72: #{self_attn_pallas.1} parent=59 // pred_check
                _
              $region73: #{self_attn_pallas.1} parent=59 // pred_check_branch
                %370 = sbr.rel (0) target = $region75
              $region74: #{self_attn_pallas.1} parent=59 // pred_region
                loop: start=0, step=1, limit=1
                $region76: #{self_attn_pallas.1} parent=74 // loop_pre_header
                  _
                $region77: #{self_attn_pallas.1} parent=74 // loop_header
                  %s372 = sphi 0, %s376
                  %p373 = scmp.ge.s32.totalorder %s372, 1
                  %s377 = sphi %s348, %s348
                  %s378 = sphi %s344, %s344
                $region78: #{self_attn_pallas.1} parent=74 // loop_header_branch
                  %375 = sbr.rel (%p373) target = $region82
                $region79: #{self_attn_pallas.1} parent=74 // loop_body
                  %v379 = vld [vmem:[%s377] sm:$0xff]
                  %380 = vst [vmem:[%s378] sm:$0xff] %v379
                  %v381 = vld [vmem:[%s377 + $0x10] sm:$0xff]
                  %382 = vst [vmem:[%s378 + $0x8] sm:$0xff] %v381
                $region80: #{self_attn_pallas.1} parent=74 // loop_footer
                  %s376 = sadd.s32 1, %s372
                $region81: #{self_attn_pallas.1} parent=74 // loop_footer_branch
                  %371 = sbr.rel target = $region77
                $region82: #{self_attn_pallas.1} parent=74 // loop_exit
                  _
              $region75: #{self_attn_pallas.1} parent=59 // pred_fallthru
                _
              // Predicated region
              $region83: #{self_attn_pallas.1} parent=59 // pred_check
                _
              $region84: #{self_attn_pallas.1} parent=59 // pred_check_branch
                %384 = sbr.rel target = $region86
              $region85: #{self_attn_pallas.1} parent=59 // pred_region
                _
              $region86: #{self_attn_pallas.1} parent=59 // pred_fallthru
                _
            $region60: #{self_attn_pallas.1} parent=55 // pred_fallthru
              _
            // Predicated region
            $region61: #{self_attn_pallas.1} parent=55 // pred_check
              _
            $region62: #{self_attn_pallas.1} parent=55 // pred_check_branch
              %354 = sbr.rel target = $region64
            $region63: #{self_attn_pallas.1} parent=55 // pred_region
              %s356 = ssub.s32 256, 1
              loop: start=0, step=1, limit=1
              $region65: #{self_attn_pallas.1} parent=63 // loop_pre_header
                _
              $region66: #{self_attn_pallas.1} parent=63 // loop_header
                %s358 = sphi 0, %s362
                %p359 = scmp.ge.s32.totalorder %s358, 1
                %s363 = sphi %s348, %s348
                %s364 = sphi %s344, %s344
              $region67: #{self_attn_pallas.1} parent=63 // loop_header_branch
                %361 = sbr.rel (%p359) target = $region71
              $region68: #{self_attn_pallas.1} parent=63 // loop_body
                %v365 = vld [vmem:[%s363] sm:%s356]
                %366 = vst [vmem:[%s364] sm:%s356] %v365
                %v367 = vld [vmem:[%s363 + $0x10] sm:%s356]
                %368 = vst [vmem:[%s364 + $0x8] sm:%s356] %v367
              $region69: #{self_attn_pallas.1} parent=63 // loop_footer
                %s362 = sadd.s32 1, %s358
              $region70: #{self_attn_pallas.1} parent=63 // loop_footer_branch
                %357 = sbr.rel target = $region66
              $region71: #{self_attn_pallas.1} parent=63 // loop_exit
                _
            $region64: #{self_attn_pallas.1} parent=55 // pred_fallthru
              _
          $region56: #{self_attn_pallas.1} parent=51 // pred_fallthru
            _
          %385 = vnop
        $region52: #{self_attn_pallas.1} parent=43 // pred_fallthru
          _
      $region44: #{self_attn_pallas.1} parent=5 // pred_fallthru
        _
      %p386 = scmp.le.s32.totalorder 1, %s21
      %p387 = scmp.lt.s32.totalorder %s21, 5
      %p388 = pnand %p386, %p387
      %p389 = pneg %p388
      // Predicated region
      $region87: #{self_attn_pallas.1} parent=5 // pred_check
        _
      $region88: #{self_attn_pallas.1} parent=5 // pred_check_branch
        %391 = sbr.rel (%p388) target = $region90
      $region89: #{self_attn_pallas.1} parent=5 // pred_region
        %s392 = ssub.s32 %s21, 1
        %s393 = sand.u32 %s74, 1
        %s394 = sand.u32 %s74, 1
        %s395 = smul.addr %s394, 16
        %s396 = scalar_lea.vmem [#allocation5], %s395
        // Predicated region
        $region91: #{self_attn_pallas.1} parent=89 // pred_check
          %p397 = pneg %p87
        $region92: #{self_attn_pallas.1} parent=89 // pred_check_branch
          %399 = sbr.rel (%p397) target = $region94
        $region93: #{self_attn_pallas.1} parent=89 // pred_region
          _
        $region94: #{self_attn_pallas.1} parent=89 // pred_fallthru
          _
        %p400 = scmp.lt.s32.totalorder %s30, 1
        %s401 = scalar_select %p400, %s30, 1
        %s402 = smul.addr %s401, 4
        %s403 = smul.addr %s402, 8
        %s404 = scalar_lea.vmem %s0, %s403
        %p405 = pneg %p59
        %p406 = pneg %p56
        %s407 = sand.u32 %s74, 1
        %s408 = sand.u32 %s74, 1
        %s409 = smul.addr %s408, 16
        %s410 = scalar_lea.vmem [#allocation5], %s409
        %p411 = pneg %p87
        %p412 = pneg %p84
        %p413 = pneg %p108
        %p414 = pneg %p105
        %p415 = pneg %p129
        %p416 = pneg %p126
        %p417 = pneg %p150
        %p418 = pneg %p147
        %p419 = pneg %p171
        %p420 = pneg %p168
        %p421 = pneg %p192
        %p422 = pneg %p189
        %p423 = pneg %p213
        %p424 = pneg %p210
        %p425 = pneg %p234
        %p426 = pneg %p231
        %p427 = pneg %p262
        %p428 = pneg %p259
        %s429 = sand.u32 %s249, 1
        %s430 = sand.u32 %s249, 1
        %s431 = smul.addr %s430, 16
        %s432 = scalar_lea.vmem [#allocation6], %s431
        %p433 = pneg %p290
        %p434 = pneg %p287
        %s435 = sand.u32 %s277, 1
        %s436 = scalar_lea.sflag [#allocation8], %s435
        %s437 = sand.u32 %s277, 1
        %s438 = smul.addr %s437, 256
        %s439 = scalar_lea.vmem [#allocation7], %s438
        %p440 = scmp.lt.s32.totalorder %s30, 1
        %s441 = scalar_select %p440, %s30, 1
        %s442 = smul.addr %s441, 4
        %s443 = smul.addr %s442, 8
        %s444 = scalar_lea.vmem %s0, %s443
        %s445 = smul.u32 16, %s31
        %p447 = scmp.eq.s32.totalorder %s31, 0
        // Predicated region
        $region95: #{self_attn_pallas.1} parent=89 // pred_check
          %p448 = pneg %p447
        $region96: #{self_attn_pallas.1} parent=89 // pred_check_branch
          %450 = sbr.rel (%p448) target = $region98
        $region97: #{self_attn_pallas.1} parent=89 // pred_region
          %v451 = vld [vmem:[%s444] sm:$0xff]
          %v452 = vld [vmem:[%s444 + $0x8] sm:$0xff]
          %v453 = vld [vmem:[%s444 + $0x10] sm:$0xff]
          %v454 = vld [vmem:[%s444 + $0x18] sm:$0xff]
          %v455 = vpack.c.bf16 %v453, %v451
          %v456 = vpack.c.bf16 %v454, %v452
          %v457 = vld [vmem:[%s4] sm:$0x3]
          %v458 = vpack.c.bf16 %v457, %v457
          %v459 = vld [vmem:[%s5] sm:$0x3]
          %461 = vset.pattern.permute.xlu0 0
          %462 = vperm.xlu0 %461, %v459
          %v463 = vpop.permute.xlu0 %462
          %vm465 = vcmask 130048
          %v467 = vsel %vm465, %v458, 0
          %469 = vmatprep.subr.bf16.mxu0 0
          %470 = vmatpush1.bf16.msra.mxu0 0
          %471 = vmatprep.subr.bf16.mxu0 0
          %472 = vmatpush1.bf16.msra.mxu0 0
          %473 = vmatprep.subr.bf16.mxu0 0
          %474 = vmatpush1.bf16.msra.mxu0 0
          %475 = vmatprep.subr.bf16.mxu0 0
          %476 = vmatpush1.bf16.msra.mxu0 0
          %477 = vmatprep.subr.bf16.mxu0 0
          %478 = vmatpush1.bf16.msra.mxu0 0
          %479 = vmatprep.subr.bf16.mxu0 0
          %480 = vmatpush1.bf16.msra.mxu0 0
          %481 = vmatprep.subr.bf16.mxu0 0
          %482 = vmatpush1.bf16.msra.mxu0 0
          %483 = vmatprep.subr.bf16.mxu0 %v456
          %484 = vmatpush1.bf16.msra.mxu0 %v455
          %485 = vmatprep.subr.bf16.mxu0 0
          %486 = vmatpush2.bf16.msra.mxu0 0
          %487 = vmatprep.subr.bf16.mxu0 0
          %488 = vmatpush2.bf16.msra.mxu0 0
          %489 = vmatprep.subr.bf16.mxu0 0
          %490 = vmatpush2.bf16.msra.mxu0 0
          %491 = vmatprep.subr.bf16.mxu0 0
          %492 = vmatpush2.bf16.msra.mxu0 0
          %493 = vmatprep.subr.bf16.mxu0 0
          %494 = vmatpush2.bf16.msra.mxu0 0
          %495 = vmatprep.subr.bf16.mxu0 0
          %496 = vmatpush2.bf16.msra.mxu0 0
          %497 = vmatprep.subr.bf16.mxu0 0
          %498 = vmatpush2.bf16.msra.mxu0 0
          %499 = vmatprep.subr.bf16.mxu0 0
          %500 = vmatpush2.bf16.msra.mxu0 0
          %501 = vmatprep.mubr.bf16.mxu0 0
          %502 = vmatmul.mubr.bf16.gmra.mxu0 %v467
          %v503 = vpop.f32.mrf.mxu0
          %v504 = vadd.f32 %v463, %v503
          %v505 = vpop.f32.mrf.mxu0
          %v506 = vadd.f32 %v463, %v505
          %v507 = vpop.f32.mrf.mxu0
          %v508 = vpop.f32.mrf.mxu0
          %509 = vdwg.mxu0
          %v510 = vld [vmem:[%s6] sm:$0xff]
          %v511 = vld [vmem:[%s6 + $0x8] sm:$0xff]
          %v512 = vpack.c.bf16 %v511, %v510
          %v513 = vld [vmem:[%s7] sm:$0xff]
          %v514 = vld [vmem:[%s7 + $0x8] sm:$0xff]
          %516 = vset.pattern.permute.xlu0 0
          %517 = vperm.xlu0 %516, %v513
          %v518 = vpop.permute.xlu0 %517
          %521 = vset.pattern.permute.xlu0 0
          %522 = vperm.xlu0 %521, %v514
          %v523 = vpop.permute.xlu0 %522
          %v526 = vsel %vm465, %v512, 0
          %528 = vmatprep.subr.bf16.mxu0 0
          %529 = vmatpush1.bf16.msra.mxu0 0
          %530 = vmatprep.subr.bf16.mxu0 0
          %531 = vmatpush1.bf16.msra.mxu0 0
          %532 = vmatprep.subr.bf16.mxu0 0
          %533 = vmatpush1.bf16.msra.mxu0 0
          %534 = vmatprep.subr.bf16.mxu0 0
          %535 = vmatpush1.bf16.msra.mxu0 0
          %536 = vmatprep.subr.bf16.mxu0 0
          %537 = vmatpush1.bf16.msra.mxu0 0
          %538 = vmatprep.subr.bf16.mxu0 0
          %539 = vmatpush1.bf16.msra.mxu0 0
          %540 = vmatprep.subr.bf16.mxu0 0
          %541 = vmatpush1.bf16.msra.mxu0 0
          %542 = vmatprep.subr.bf16.mxu0 %v456
          %543 = vmatpush1.bf16.msra.mxu0 %v455
          %544 = vmatprep.subr.bf16.mxu0 0
          %545 = vmatpush2.bf16.msra.mxu0 0
          %546 = vmatprep.subr.bf16.mxu0 0
          %547 = vmatpush2.bf16.msra.mxu0 0
          %548 = vmatprep.subr.bf16.mxu0 0
          %549 = vmatpush2.bf16.msra.mxu0 0
          %550 = vmatprep.subr.bf16.mxu0 0
          %551 = vmatpush2.bf16.msra.mxu0 0
          %552 = vmatprep.subr.bf16.mxu0 0
          %553 = vmatpush2.bf16.msra.mxu0 0
          %554 = vmatprep.subr.bf16.mxu0 0
          %555 = vmatpush2.bf16.msra.mxu0 0
          %556 = vmatprep.subr.bf16.mxu0 0
          %557 = vmatpush2.bf16.msra.mxu0 0
          %558 = vmatprep.subr.bf16.mxu0 0
          %559 = vmatpush2.bf16.msra.mxu0 0
          %560 = vmatprep.mubr.bf16.mxu0 0
          %561 = vmatmul.mubr.bf16.gmra.mxu0 %v526
          %v562 = vpop.f32.mrf.mxu0
          %v563 = vadd.f32 %v518, %v562
          %v564 = vpop.f32.mrf.mxu0
          %v565 = vadd.f32 %v518, %v564
          %v566 = vpop.f32.mrf.mxu0
          %v567 = vadd.f32 %v523, %v566
          %v568 = vpop.f32.mrf.mxu0
          %v569 = vadd.f32 %v523, %v568
          %570 = vdwg.mxu0
          %v571 = vpack.c.bf16 %v504, %v504
          %v572 = vpack.c.bf16 %v506, %v506
          %v575 = vcombine.low %v571, %v572
          %v577 = vunpack.c.l.s4 1966171168
          %v578 = vunpack.c.0.s8 %v577
          %v579 = vlaneseq
          %v580 = vshrl.u32 %v579, 7
          %v581 = vsub.s32 %v578, %v580
          %v582 = vrot.slane %v575, %v581
          %v584 = vunpack.c.l.s4 1966171168
          %v585 = vunpack.c.0.s8 %v584
          %v586 = vlaneseq
          %v587 = vshrl.u32 %v586, 7
          %v588 = vsub.s32 %v585, %v587
          %v589 = vrot.slane %v582, %v588
          %591 = vst [vmem:[#allocation2] sm:$0x3] %v589
          %v592 = vpack.c.bf16 %v567, %v563
          %v593 = vpack.c.bf16 %v569, %v565
          %v596 = vunpack.c.l.b16 %v592
          %v597 = vunpack.c.l.b16 %v593
          %v598 = vunpack.c.h.b16 %v592
          %v599 = vunpack.c.h.b16 %v593
          %v600 = vpack.c.b16 %v597, %v596
          %v601 = vpack.c.b16 %v599, %v598
          %604 = vst [vmem:[#allocation3] sm:$0xff] %v600
          %605 = vst [vmem:[#allocation3 + $0x8] sm:$0xff] %v601
        $region98: #{self_attn_pallas.1} parent=89 // pred_fallthru
          _
        %v606 = vld [vmem:[%s396] sm:$0xff]
        %v607 = vld [vmem:[%s396 + $0x8] sm:$0xff]
        %v608 = vld [vmem:[%s2] sm:$0x3]
        %v609 = vpack.c.bf16 %v608, %v608
        %v610 = vpack.c.bf16 %v607, %v606
        %v611 = vld [vmem:[%s3] sm:$0x3]
        %613 = vset.pattern.permute.xlu0 0
        %614 = vperm.xlu0 %613, %v611
        %v615 = vpop.permute.xlu0 %614
        %vm617 = vcmask 130048
        %v619 = vsel %vm617, %v609, 0
        %621 = vmatprep.subr.bf16.mxu0 0
        %622 = vmatpush1.bf16.msra.mxu0 0
        %623 = vmatprep.subr.bf16.mxu0 0
        %624 = vmatpush1.bf16.msra.mxu0 0
        %625 = vmatprep.subr.bf16.mxu0 0
        %626 = vmatpush1.bf16.msra.mxu0 0
        %627 = vmatprep.subr.bf16.mxu0 0
        %628 = vmatpush1.bf16.msra.mxu0 0
        %629 = vmatprep.subr.bf16.mxu0 0
        %630 = vmatpush1.bf16.msra.mxu0 0
        %631 = vmatprep.subr.bf16.mxu0 0
        %632 = vmatpush1.bf16.msra.mxu0 0
        %633 = vmatprep.subr.bf16.mxu0 0
        %634 = vmatpush1.bf16.msra.mxu0 0
        %635 = vmatprep.subr.bf16.mxu0 0
        %636 = vmatpush1.bf16.msra.mxu0 %v610
        %637 = vmatprep.subr.bf16.mxu0 0
        %638 = vmatpush2.bf16.msra.mxu0 0
        %639 = vmatprep.subr.bf16.mxu0 0
        %640 = vmatpush2.bf16.msra.mxu0 0
        %641 = vmatprep.subr.bf16.mxu0 0
        %642 = vmatpush2.bf16.msra.mxu0 0
        %643 = vmatprep.subr.bf16.mxu0 0
        %644 = vmatpush2.bf16.msra.mxu0 0
        %645 = vmatprep.subr.bf16.mxu0 0
        %646 = vmatpush2.bf16.msra.mxu0 0
        %647 = vmatprep.subr.bf16.mxu0 0
        %648 = vmatpush2.bf16.msra.mxu0 0
        %649 = vmatprep.subr.bf16.mxu0 0
        %650 = vmatpush2.bf16.msra.mxu0 0
        %651 = vmatprep.subr.bf16.mxu0 0
        %652 = vmatpush2.bf16.msra.mxu0 0
        %653 = vmatprep.mubr.bf16.mxu0 0
        %654 = vmatmul.mubr.bf16.gmra.mxu0 %v619
        %v655 = vpop.f32.mrf.mxu0
        %v656 = vadd.f32 %v615, %v655
        %v657 = vpop.f32.mrf.mxu0
        %v658 = vpop.f32.mrf.mxu0
        %v659 = vpop.f32.mrf.mxu0
        %660 = vdwg.mxu0
        %v661 = vpack.c.bf16 %v656, %v656
        %v662 = vld [vmem:[#allocation2] sm:$0x3]
        %663 = vxpose.xlu0.c.b16.start [1/8] %v661, 128
        %664 = vxpose.xlu0.c.b16.cont [2/8] 0, 128
        %665 = vxpose.xlu0.c.b16.cont [3/8] 0, 128
        %666 = vxpose.xlu0.c.b16.cont [4/8] 0, 128
        %667 = vxpose.xlu0.c.b16.cont [5/8] 0, 128
        %668 = vxpose.xlu0.c.b16.cont [6/8] 0, 128
        %669 = vxpose.xlu0.c.b16.cont [7/8] 0, 128
        %670 = vxpose.xlu0.c.b16.end [8/8] 0, 128
        %v671 = vpop.trf.xlu0
        %v672 = vpop.trf.xlu0
        %v673 = vpop.trf.xlu0
        %v674 = vpop.trf.xlu0
        %v675 = vpop.trf.xlu0
        %v676 = vpop.trf.xlu0
        %v677 = vpop.trf.xlu0
        %v678 = vpop.trf.xlu0
        %v681 = vunpack.c.l.s4 1966171168
        %v682 = vunpack.c.0.s8 %v681
        %v683 = vlaneseq
        %v684 = vshrl.u32 %v683, 7
        %v685 = vsub.s32 %v682, %v684
        %v686 = vrot.slane %v662, %v685
        %v687 = vcombine.high %v686, %v686
        %v689 = vunpack.c.l.s4 1966171168
        %v690 = vunpack.c.0.s8 %v689
        %v691 = vlaneseq
        %v692 = vshrl.u32 %v691, 7
        %v693 = vsub.s32 %v690, %v692
        %v694 = vrot.slane %v686, %v693
        %v696 = vunpack.c.l.s4 1966171168
        %v697 = vunpack.c.0.s8 %v696
        %v698 = vlaneseq
        %v699 = vshrl.u32 %v698, 7
        %v700 = vsub.s32 %v697, %v699
        %v701 = vrot.slane %v687, %v700
        %vm702 = vcmask 15360
        %v704 = vsel %vm702, %v671, 0
        %v707 = vsel %vm702, %v672, 0
        %v710 = vsel %vm702, %v673, 0
        %v713 = vsel %vm702, %v674, 0
        %v716 = vsel %vm702, %v675, 0
        %v719 = vsel %vm702, %v676, 0
        %v722 = vsel %vm702, %v677, 0
        %v725 = vsel %vm702, %v678, 0
        %vm727 = vcmask 1040384
        %v729 = vsel %vm727, %v694, 0
        %v732 = vsel %vm727, %v701, 0
        %734 = vmatprep.subr.bf16.mxu0 0
        %735 = vmatpush1.bf16.msra.mxu0 0
        %736 = vmatprep.subr.bf16.mxu0 0
        %737 = vmatpush1.bf16.msra.mxu0 0
        %738 = vmatprep.subr.bf16.mxu0 0
        %739 = vmatpush1.bf16.msra.mxu0 0
        %740 = vmatprep.subr.bf16.mxu0 0
        %741 = vmatpush1.bf16.msra.mxu0 0
        %742 = vmatprep.subr.bf16.mxu0 0
        %743 = vmatpush1.bf16.msra.mxu0 0
        %744 = vmatprep.subr.bf16.mxu0 0
        %745 = vmatpush1.bf16.msra.mxu0 0
        %746 = vmatprep.subr.bf16.mxu0 0
        %747 = vmatpush1.bf16.msra.mxu0 0
        %748 = vmatprep.subr.bf16.mxu0 %v732
        %749 = vmatpush1.bf16.msra.mxu0 %v729
        %750 = vmatprep.subr.bf16.mxu0 0
        %751 = vmatpush2.bf16.msra.mxu0 0
        %752 = vmatprep.subr.bf16.mxu0 0
        %753 = vmatpush2.bf16.msra.mxu0 0
        %754 = vmatprep.subr.bf16.mxu0 0
        %755 = vmatpush2.bf16.msra.mxu0 0
        %756 = vmatprep.subr.bf16.mxu0 0
        %757 = vmatpush2.bf16.msra.mxu0 0
        %758 = vmatprep.subr.bf16.mxu0 0
        %759 = vmatpush2.bf16.msra.mxu0 0
        %760 = vmatprep.subr.bf16.mxu0 0
        %761 = vmatpush2.bf16.msra.mxu0 0
        %762 = vmatprep.subr.bf16.mxu0 0
        %763 = vmatpush2.bf16.msra.mxu0 0
        %764 = vmatprep.subr.bf16.mxu0 0
        %765 = vmatpush2.bf16.msra.mxu0 0
        %766 = vmatprep.mubr.bf16.mxu0 0
        %767 = vmatmul.mubr.bf16.gmra.mxu0 %v704
        %v768 = vpop.f32.mrf.mxu0
        %v769 = vadd.f32 0.0, %v768
        %v770 = vpop.f32.mrf.mxu0
        %v771 = vadd.f32 0.0, %v770
        %v772 = vpop.f32.mrf.mxu0
        %v773 = vadd.f32 0.0, %v772
        %v774 = vpop.f32.mrf.mxu0
        %v775 = vadd.f32 0.0, %v774
        %776 = vmatprep.mubr.bf16.mxu0 0
        %777 = vmatmul.mubr.bf16.gmra.mxu0 %v707
        %v778 = vpop.f32.mrf.mxu0
        %v779 = vadd.f32 0.0, %v778
        %v780 = vpop.f32.mrf.mxu0
        %v781 = vadd.f32 0.0, %v780
        %v782 = vpop.f32.mrf.mxu0
        %v783 = vadd.f32 0.0, %v782
        %v784 = vpop.f32.mrf.mxu0
        %v785 = vadd.f32 0.0, %v784
        %786 = vmatprep.mubr.bf16.mxu0 0
        %787 = vmatmul.mubr.bf16.gmra.mxu0 %v710
        %v788 = vpop.f32.mrf.mxu0
        %v789 = vadd.f32 0.0, %v788
        %v790 = vpop.f32.mrf.mxu0
        %v791 = vadd.f32 0.0, %v790
        %v792 = vpop.f32.mrf.mxu0
        %v793 = vadd.f32 0.0, %v792
        %v794 = vpop.f32.mrf.mxu0
        %v795 = vadd.f32 0.0, %v794
        %796 = vmatprep.mubr.bf16.mxu0 0
        %797 = vmatmul.mubr.bf16.gmra.mxu0 %v713
        %v798 = vpop.f32.mrf.mxu0
        %v799 = vadd.f32 0.0, %v798
        %v800 = vpop.f32.mrf.mxu0
        %v801 = vadd.f32 0.0, %v800
        %v802 = vpop.f32.mrf.mxu0
        %v803 = vadd.f32 0.0, %v802
        %v804 = vpop.f32.mrf.mxu0
        %v805 = vadd.f32 0.0, %v804
        %806 = vmatprep.mubr.bf16.mxu0 0
        %807 = vmatmul.mubr.bf16.gmra.mxu0 %v716
        %v808 = vpop.f32.mrf.mxu0
        %v809 = vadd.f32 0.0, %v808
        %v810 = vpop.f32.mrf.mxu0
        %v811 = vadd.f32 0.0, %v810
        %v812 = vpop.f32.mrf.mxu0
        %v813 = vadd.f32 0.0, %v812
        %v814 = vpop.f32.mrf.mxu0
        %v815 = vadd.f32 0.0, %v814
        %816 = vmatprep.mubr.bf16.mxu0 0
        %817 = vmatmul.mubr.bf16.gmra.mxu0 %v719
        %v818 = vpop.f32.mrf.mxu0
        %v819 = vadd.f32 0.0, %v818
        %v820 = vpop.f32.mrf.mxu0
        %v821 = vadd.f32 0.0, %v820
        %v822 = vpop.f32.mrf.mxu0
        %v823 = vadd.f32 0.0, %v822
        %v824 = vpop.f32.mrf.mxu0
        %v825 = vadd.f32 0.0, %v824
        %826 = vmatprep.mubr.bf16.mxu0 0
        %827 = vmatmul.mubr.bf16.gmra.mxu0 %v722
        %v828 = vpop.f32.mrf.mxu0
        %v829 = vadd.f32 0.0, %v828
        %v830 = vpop.f32.mrf.mxu0
        %v831 = vadd.f32 0.0, %v830
        %v832 = vpop.f32.mrf.mxu0
        %v833 = vadd.f32 0.0, %v832
        %v834 = vpop.f32.mrf.mxu0
        %v835 = vadd.f32 0.0, %v834
        %836 = vmatprep.mubr.bf16.mxu0 0
        %837 = vmatmul.mubr.bf16.gmra.mxu0 %v725
        %v838 = vpop.f32.mrf.mxu0
        %v839 = vadd.f32 0.0, %v838
        %v840 = vpop.f32.mrf.mxu0
        %v841 = vadd.f32 0.0, %v840
        %v842 = vpop.f32.mrf.mxu0
        %v843 = vadd.f32 0.0, %v842
        %v844 = vpop.f32.mrf.mxu0
        %v845 = vadd.f32 0.0, %v844
        %846 = vdwg.mxu0
        %v847 = vmax.f32 %v769, %v771
        %848 = vmax.xlane.f32.xlu0 %v847
        %v849 = vpop.xlane.xlu0 %848
        %v850 = vmax.f32 %v773, %v775
        %851 = vmax.xlane.f32.xlu0 %v850
        %v852 = vpop.xlane.xlu0 %851
        %v853 = vmax.f32 %v779, %v781
        %854 = vmax.xlane.f32.xlu0 %v853
        %v855 = vpop.xlane.xlu0 %854
        %v856 = vmax.f32 %v783, %v785
        %857 = vmax.xlane.f32.xlu0 %v856
        %v858 = vpop.xlane.xlu0 %857
        %v859 = vmax.f32 %v789, %v791
        %860 = vmax.xlane.f32.xlu0 %v859
        %v861 = vpop.xlane.xlu0 %860
        %v862 = vmax.f32 %v793, %v795
        %863 = vmax.xlane.f32.xlu0 %v862
        %v864 = vpop.xlane.xlu0 %863
        %v865 = vmax.f32 %v799, %v801
        %866 = vmax.xlane.f32.xlu0 %v865
        %v867 = vpop.xlane.xlu0 %866
        %v868 = vmax.f32 %v803, %v805
        %869 = vmax.xlane.f32.xlu0 %v868
        %v870 = vpop.xlane.xlu0 %869
        %v871 = vmax.f32 %v809, %v811
        %872 = vmax.xlane.f32.xlu0 %v871
        %v873 = vpop.xlane.xlu0 %872
        %v874 = vmax.f32 %v813, %v815
        %875 = vmax.xlane.f32.xlu0 %v874
        %v876 = vpop.xlane.xlu0 %875
        %v877 = vmax.f32 %v819, %v821
        %878 = vmax.xlane.f32.xlu0 %v877
        %v879 = vpop.xlane.xlu0 %878
        %v880 = vmax.f32 %v823, %v825
        %881 = vmax.xlane.f32.xlu0 %v880
        %v882 = vpop.xlane.xlu0 %881
        %v883 = vmax.f32 %v829, %v831
        %884 = vmax.xlane.f32.xlu0 %v883
        %v885 = vpop.xlane.xlu0 %884
        %v886 = vmax.f32 %v833, %v835
        %887 = vmax.xlane.f32.xlu0 %v886
        %v888 = vpop.xlane.xlu0 %887
        %v889 = vmax.f32 %v839, %v841
        %890 = vmax.xlane.f32.xlu0 %v889
        %v891 = vpop.xlane.xlu0 %890
        %v892 = vmax.f32 %v843, %v845
        %893 = vmax.xlane.f32.xlu0 %v892
        %v894 = vpop.xlane.xlu0 %893
        %v895 = vsub.f32 %v769, %v849
        %v896 = vsub.f32 %v771, %v849
        %v897 = vsub.f32 %v773, %v852
        %v898 = vsub.f32 %v775, %v852
        %v899 = vsub.f32 %v779, %v855
        %v900 = vsub.f32 %v781, %v855
        %v901 = vsub.f32 %v783, %v858
        %v902 = vsub.f32 %v785, %v858
        %v903 = vsub.f32 %v789, %v861
        %v904 = vsub.f32 %v791, %v861
        %v905 = vsub.f32 %v793, %v864
        %v906 = vsub.f32 %v795, %v864
        %v907 = vsub.f32 %v799, %v867
        %v908 = vsub.f32 %v801, %v867
        %v909 = vsub.f32 %v803, %v870
        %v910 = vsub.f32 %v805, %v870
        %v911 = vsub.f32 %v809, %v873
        %v912 = vsub.f32 %v811, %v873
        %v913 = vsub.f32 %v813, %v876
        %v914 = vsub.f32 %v815, %v876
        %v915 = vsub.f32 %v819, %v879
        %v916 = vsub.f32 %v821, %v879
        %v917 = vsub.f32 %v823, %v882
        %v918 = vsub.f32 %v825, %v882
        %v919 = vsub.f32 %v829, %v885
        %v920 = vsub.f32 %v831, %v885
        %v921 = vsub.f32 %v833, %v888
        %v922 = vsub.f32 %v835, %v888
        %v923 = vsub.f32 %v839, %v891
        %v924 = vsub.f32 %v841, %v891
        %v925 = vsub.f32 %v843, %v894
        %v926 = vsub.f32 %v845, %v894
        %v927 = vmul.f32 %v895, 1.442695
        %v928 = vpow.pop %v927
        %v929 = vmul.f32 %v896, 1.442695
        %v930 = vpow.pop %v929
        %v931 = vmul.f32 %v897, 1.442695
        %v932 = vpow.pop %v931
        %v933 = vmul.f32 %v898, 1.442695
        %v934 = vpow.pop %v933
        %v935 = vmul.f32 %v899, 1.442695
        %v936 = vpow.pop %v935
        %v937 = vmul.f32 %v900, 1.442695
        %v938 = vpow.pop %v937
        %v939 = vmul.f32 %v901, 1.442695
        %v940 = vpow.pop %v939
        %v941 = vmul.f32 %v902, 1.442695
        %v942 = vpow.pop %v941
        %v943 = vmul.f32 %v903, 1.442695
        %v944 = vpow.pop %v943
        %v945 = vmul.f32 %v904, 1.442695
        %v946 = vpow.pop %v945
        %v947 = vmul.f32 %v905, 1.442695
        %v948 = vpow.pop %v947
        %v949 = vmul.f32 %v906, 1.442695
        %v950 = vpow.pop %v949
        %v951 = vmul.f32 %v907, 1.442695
        %v952 = vpow.pop %v951
        %v953 = vmul.f32 %v908, 1.442695
        %v954 = vpow.pop %v953
        %v955 = vmul.f32 %v909, 1.442695
        %v956 = vpow.pop %v955
        %v957 = vmul.f32 %v910, 1.442695
        %v958 = vpow.pop %v957
        %v959 = vmul.f32 %v911, 1.442695
        %v960 = vpow.pop %v959
        %v961 = vmul.f32 %v912, 1.442695
        %v962 = vpow.pop %v961
        %v963 = vmul.f32 %v913, 1.442695
        %v964 = vpow.pop %v963
        %v965 = vmul.f32 %v914, 1.442695
        %v966 = vpow.pop %v965
        %v967 = vmul.f32 %v915, 1.442695
        %v968 = vpow.pop %v967
        %v969 = vmul.f32 %v916, 1.442695
        %v970 = vpow.pop %v969
        %v971 = vmul.f32 %v917, 1.442695
        %v972 = vpow.pop %v971
        %v973 = vmul.f32 %v918, 1.442695
        %v974 = vpow.pop %v973
        %v975 = vmul.f32 %v919, 1.442695
        %v976 = vpow.pop %v975
        %v977 = vmul.f32 %v920, 1.442695
        %v978 = vpow.pop %v977
        %v979 = vmul.f32 %v921, 1.442695
        %v980 = vpow.pop %v979
        %v981 = vmul.f32 %v922, 1.442695
        %v982 = vpow.pop %v981
        %v983 = vmul.f32 %v923, 1.442695
        %v984 = vpow.pop %v983
        %v985 = vmul.f32 %v924, 1.442695
        %v986 = vpow.pop %v985
        %v987 = vmul.f32 %v925, 1.442695
        %v988 = vpow.pop %v987
        %v989 = vmul.f32 %v926, 1.442695
        %v990 = vpow.pop %v989
        %v991 = vadd.f32 %v928, %v930
        %992 = vadd.xlane.f32.xlu0 %v991
        %v993 = vpop.xlane.xlu0 %992
        %v994 = vadd.f32 %v932, %v934
        %995 = vadd.xlane.f32.xlu0 %v994
        %v996 = vpop.xlane.xlu0 %995
        %v997 = vadd.f32 %v936, %v938
        %998 = vadd.xlane.f32.xlu0 %v997
        %v999 = vpop.xlane.xlu0 %998
        %v1000 = vadd.f32 %v940, %v942
        %1001 = vadd.xlane.f32.xlu0 %v1000
        %v1002 = vpop.xlane.xlu0 %1001
        %v1003 = vadd.f32 %v944, %v946
        %1004 = vadd.xlane.f32.xlu0 %v1003
        %v1005 = vpop.xlane.xlu0 %1004
        %v1006 = vadd.f32 %v948, %v950
        %1007 = vadd.xlane.f32.xlu0 %v1006
        %v1008 = vpop.xlane.xlu0 %1007
        %v1009 = vadd.f32 %v952, %v954
        %1010 = vadd.xlane.f32.xlu0 %v1009
        %v1011 = vpop.xlane.xlu0 %1010
        %v1012 = vadd.f32 %v956, %v958
        %1013 = vadd.xlane.f32.xlu0 %v1012
        %v1014 = vpop.xlane.xlu0 %1013
        %v1015 = vadd.f32 %v960, %v962
        %1016 = vadd.xlane.f32.xlu0 %v1015
        %v1017 = vpop.xlane.xlu0 %1016
        %v1018 = vadd.f32 %v964, %v966
        %1019 = vadd.xlane.f32.xlu0 %v1018
        %v1020 = vpop.xlane.xlu0 %1019
        %v1021 = vadd.f32 %v968, %v970
        %1022 = vadd.xlane.f32.xlu0 %v1021
        %v1023 = vpop.xlane.xlu0 %1022
        %v1024 = vadd.f32 %v972, %v974
        %1025 = vadd.xlane.f32.xlu0 %v1024
        %v1026 = vpop.xlane.xlu0 %1025
        %v1027 = vadd.f32 %v976, %v978
        %1028 = vadd.xlane.f32.xlu0 %v1027
        %v1029 = vpop.xlane.xlu0 %1028
        %v1030 = vadd.f32 %v980, %v982
        %1031 = vadd.xlane.f32.xlu0 %v1030
        %v1032 = vpop.xlane.xlu0 %1031
        %v1033 = vadd.f32 %v984, %v986
        %1034 = vadd.xlane.f32.xlu0 %v1033
        %v1035 = vpop.xlane.xlu0 %1034
        %v1036 = vadd.f32 %v988, %v990
        %1037 = vadd.xlane.f32.xlu0 %v1036
        %v1038 = vpop.xlane.xlu0 %1037
        %v1039 = vrcp.pop %v993
        %v1040 = vrcp.pop %v996
        %v1041 = vrcp.pop %v999
        %v1042 = vrcp.pop %v1002
        %v1043 = vrcp.pop %v1005
        %v1044 = vrcp.pop %v1008
        %v1045 = vrcp.pop %v1011
        %v1046 = vrcp.pop %v1014
        %v1047 = vrcp.pop %v1017
        %v1048 = vrcp.pop %v1020
        %v1049 = vrcp.pop %v1023
        %v1050 = vrcp.pop %v1026
        %v1051 = vrcp.pop %v1029
        %v1052 = vrcp.pop %v1032
        %v1053 = vrcp.pop %v1035
        %v1054 = vrcp.pop %v1038
        %v1055 = vmul.f32 %v928, %v1039
        %v1056 = vmul.f32 %v930, %v1039
        %v1057 = vmul.f32 %v932, %v1040
        %v1058 = vmul.f32 %v934, %v1040
        %v1059 = vmul.f32 %v936, %v1041
        %v1060 = vmul.f32 %v938, %v1041
        %v1061 = vmul.f32 %v940, %v1042
        %v1062 = vmul.f32 %v942, %v1042
        %v1063 = vmul.f32 %v944, %v1043
        %v1064 = vmul.f32 %v946, %v1043
        %v1065 = vmul.f32 %v948, %v1044
        %v1066 = vmul.f32 %v950, %v1044
        %v1067 = vmul.f32 %v952, %v1045
        %v1068 = vmul.f32 %v954, %v1045
        %v1069 = vmul.f32 %v956, %v1046
        %v1070 = vmul.f32 %v958, %v1046
        %v1071 = vmul.f32 %v960, %v1047
        %v1072 = vmul.f32 %v962, %v1047
        %v1073 = vmul.f32 %v964, %v1048
        %v1074 = vmul.f32 %v966, %v1048
        %v1075 = vmul.f32 %v968, %v1049
        %v1076 = vmul.f32 %v970, %v1049
        %v1077 = vmul.f32 %v972, %v1050
        %v1078 = vmul.f32 %v974, %v1050
        %v1079 = vmul.f32 %v976, %v1051
        %v1080 = vmul.f32 %v978, %v1051
        %v1081 = vmul.f32 %v980, %v1052
        %v1082 = vmul.f32 %v982, %v1052
        %v1083 = vmul.f32 %v984, %v1053
        %v1084 = vmul.f32 %v986, %v1053
        %v1085 = vmul.f32 %v988, %v1054
        %v1086 = vmul.f32 %v990, %v1054
        %v1087 = vld [vmem:[#allocation3] sm:$0xff]
        %v1088 = vld [vmem:[#allocation3 + $0x8] sm:$0xff]
        %v1089 = vpack.c.bf16 %v1057, %v1055
        %v1090 = vpack.c.bf16 %v1058, %v1056
        %v1091 = vpack.c.bf16 %v1061, %v1059
        %v1092 = vpack.c.bf16 %v1062, %v1060
        %v1093 = vpack.c.bf16 %v1065, %v1063
        %v1094 = vpack.c.bf16 %v1066, %v1064
        %v1095 = vpack.c.bf16 %v1069, %v1067
        %v1096 = vpack.c.bf16 %v1070, %v1068
        %v1097 = vpack.c.bf16 %v1073, %v1071
        %v1098 = vpack.c.bf16 %v1074, %v1072
        %v1099 = vpack.c.bf16 %v1077, %v1075
        %v1100 = vpack.c.bf16 %v1078, %v1076
        %v1101 = vpack.c.bf16 %v1081, %v1079
        %v1102 = vpack.c.bf16 %v1082, %v1080
        %v1103 = vpack.c.bf16 %v1085, %v1083
        %v1104 = vpack.c.bf16 %v1086, %v1084
        %v1107 = vunpack.c.l.b16 %v1087
        %v1108 = vunpack.c.h.b16 %v1087
        %v1109 = vunpack.c.l.b16 %v1088
        %v1110 = vunpack.c.h.b16 %v1088
        %v1111 = vpack.c.b16 %v1109, %v1107
        %v1112 = vpack.c.b16 %v1110, %v1108
        %1115 = vmatprep.subr.bf16.mxu0 %v1104
        %1116 = vmatpush1.bf16.xpose.msra.mxu0 %v1103
        %1117 = vmatprep.subr.bf16.mxu0 %v1102
        %1118 = vmatpush1.bf16.xpose.msra.mxu0 %v1101
        %1119 = vmatprep.subr.bf16.mxu0 %v1100
        %1120 = vmatpush1.bf16.xpose.msra.mxu0 %v1099
        %1121 = vmatprep.subr.bf16.mxu0 %v1098
        %1122 = vmatpush1.bf16.xpose.msra.mxu0 %v1097
        %1123 = vmatprep.subr.bf16.mxu0 %v1096
        %1124 = vmatpush1.bf16.xpose.msra.mxu0 %v1095
        %1125 = vmatprep.subr.bf16.mxu0 %v1094
        %1126 = vmatpush1.bf16.xpose.msra.mxu0 %v1093
        %1127 = vmatprep.subr.bf16.mxu0 %v1092
        %1128 = vmatpush1.bf16.xpose.msra.mxu0 %v1091
        %1129 = vmatprep.subr.bf16.mxu0 %v1090
        %1130 = vmatpush1.bf16.xpose.msra.mxu0 %v1089
        %1131 = vmatprep.subr.bf16.mxu0 0
        %1132 = vmatpush2.bf16.xpose.msra.mxu0 0
        %1133 = vmatprep.subr.bf16.mxu0 0
        %1134 = vmatpush2.bf16.xpose.msra.mxu0 0
        %1135 = vmatprep.subr.bf16.mxu0 0
        %1136 = vmatpush2.bf16.xpose.msra.mxu0 0
        %1137 = vmatprep.subr.bf16.mxu0 0
        %1138 = vmatpush2.bf16.xpose.msra.mxu0 0
        %1139 = vmatprep.subr.bf16.mxu0 0
        %1140 = vmatpush2.bf16.xpose.msra.mxu0 0
        %1141 = vmatprep.subr.bf16.mxu0 0
        %1142 = vmatpush2.bf16.xpose.msra.mxu0 0
        %1143 = vmatprep.subr.bf16.mxu0 0
        %1144 = vmatpush2.bf16.xpose.msra.mxu0 0
        %1145 = vmatprep.subr.bf16.mxu0 0
        %1146 = vmatpush2.bf16.xpose.msra.mxu0 0
        %1147 = vmatprep.mubr.bf16.mxu0 %v1112
        %1148 = vmatmul.mubr.bf16.gmra.mxu0 %v1111
        %v1149 = vpop.f32.mrf.mxu0
        %v1150 = vadd.f32 0.0, %v1149
        %v1151 = vpop.f32.mrf.mxu0
        %v1152 = vpop.f32.mrf.mxu0
        %v1153 = vadd.f32 0.0, %v1152
        %v1154 = vpop.f32.mrf.mxu0
        %1155 = vdwg.mxu0
        %s1156 = sld [smem:[#allocation4]]
        %v1157 = vstv %s1156
        %v1158 = vmul.f32 %v1157, %v1150
        %v1159 = vmul.f32 %v1157, %v1153
        %v1160 = vadd.f32 %v1158, %v606
        %v1161 = vadd.f32 %v1159, %v607
        %1162 = vst [vmem:[%s432] sm:$0xff] %v1160
        %1163 = vst [vmem:[%s432 + $0x8] sm:$0xff] %v1161
        %1164 = vst [vmem:[%s439] sm:$0xff] %v1055
        %1165 = vst [vmem:[%s439 + $0x8] sm:$0xff] %v1056
        %1166 = vst [vmem:[%s439 + $0x10] sm:$0xff] %v1057
        %1167 = vst [vmem:[%s439 + $0x18] sm:$0xff] %v1058
        %1168 = vst [vmem:[%s439 + $0x20] sm:$0xff] %v1059
        %1169 = vst [vmem:[%s439 + $0x28] sm:$0xff] %v1060
        %1170 = vst [vmem:[%s439 + $0x30] sm:$0xff] %v1061
        %1171 = vst [vmem:[%s439 + $0x38] sm:$0xff] %v1062
        %1172 = vst [vmem:[%s439 + $0x40] sm:$0xff] %v1063
        %1173 = vst [vmem:[%s439 + $0x48] sm:$0xff] %v1064
        %1174 = vst [vmem:[%s439 + $0x50] sm:$0xff] %v1065
        %1175 = vst [vmem:[%s439 + $0x58] sm:$0xff] %v1066
        %1176 = vst [vmem:[%s439 + $0x60] sm:$0xff] %v1067
        %1177 = vst [vmem:[%s439 + $0x68] sm:$0xff] %v1068
        %1178 = vst [vmem:[%s439 + $0x70] sm:$0xff] %v1069
        %1179 = vst [vmem:[%s439 + $0x78] sm:$0xff] %v1070
        %1180 = vst [vmem:[%s439 + $0x80] sm:$0xff] %v1071
        %1181 = vst [vmem:[%s439 + $0x88] sm:$0xff] %v1072
        %1182 = vst [vmem:[%s439 + $0x90] sm:$0xff] %v1073
        %1183 = vst [vmem:[%s439 + $0x98] sm:$0xff] %v1074
        %1184 = vst [vmem:[%s439 + $0xa0] sm:$0xff] %v1075
        %1185 = vst [vmem:[%s439 + $0xa8] sm:$0xff] %v1076
        %1186 = vst [vmem:[%s439 + $0xb0] sm:$0xff] %v1077
        %1187 = vst [vmem:[%s439 + $0xb8] sm:$0xff] %v1078
        %1188 = vst [vmem:[%s439 + $0xc0] sm:$0xff] %v1079
        %1189 = vst [vmem:[%s439 + $0xc8] sm:$0xff] %v1080
        %1190 = vst [vmem:[%s439 + $0xd0] sm:$0xff] %v1081
        %1191 = vst [vmem:[%s439 + $0xd8] sm:$0xff] %v1082
        %1192 = vst [vmem:[%s439 + $0xe0] sm:$0xff] %v1083
        %1193 = vst [vmem:[%s439 + $0xe8] sm:$0xff] %v1084
        %1194 = vst [vmem:[%s439 + $0xf0] sm:$0xff] %v1085
        %1195 = vst [vmem:[%s439 + $0xf8] sm:$0xff] %v1086
        %s1196 = sand.u32 %s249, 1
        %s1197 = sand.u32 %s249, 1
        %s1198 = smul.addr %s1197, 16
        %s1199 = scalar_lea.vmem [#allocation6], %s1198
        %s1200 = sand.u32 %s277, 1
        %s1201 = scalar_lea.sflag [#allocation8], %s1200
        %s1202 = sand.u32 %s277, 1
        %s1203 = smul.addr %s1202, 256
        %s1204 = scalar_lea.vmem [#allocation7], %s1203
        // Predicated region
        $region99: #{self_attn_pallas.1} parent=89 // pred_check
          %p1205 = pneg %p259
        $region100: #{self_attn_pallas.1} parent=89 // pred_check_branch
          %1207 = sbr.rel (%p1205) target = $region102
        $region101: #{self_attn_pallas.1} parent=89 // pred_region
          %s1208 = smul.addr %s30, 4
          %s1209 = sadd.s32 %s31, %s1208
          %s1210 = smul.addr %s1209, 8
          %s1211 = scalar_lea.vmem %s9, %s1210
          // Predicated region
          $region103: #{self_attn_pallas.1} parent=101 // pred_check
            _
          $region104: #{self_attn_pallas.1} parent=101 // pred_check_branch
            %1213 = sbr.rel (0) target = $region106
          $region105: #{self_attn_pallas.1} parent=101 // pred_region
            // Predicated region
            $region107: #{self_attn_pallas.1} parent=105 // pred_check
              _
            $region108: #{self_attn_pallas.1} parent=105 // pred_check_branch
              %1215 = sbr.rel (0) target = $region110
            $region109: #{self_attn_pallas.1} parent=105 // pred_region
              // Predicated region
              $region122: #{self_attn_pallas.1} parent=109 // pred_check
                _
              $region123: #{self_attn_pallas.1} parent=109 // pred_check_branch
                %1233 = sbr.rel (0) target = $region125
              $region124: #{self_attn_pallas.1} parent=109 // pred_region
                loop: start=0, step=1, limit=1
                $region126: #{self_attn_pallas.1} parent=124 // loop_pre_header
                  _
                $region127: #{self_attn_pallas.1} parent=124 // loop_header
                  %s1235 = sphi 0, %s1239
                  %p1236 = scmp.ge.s32.totalorder %s1235, 1
                  %s1240 = sphi %s1199, %s1199
                  %s1241 = sphi %s1211, %s1211
                $region128: #{self_attn_pallas.1} parent=124 // loop_header_branch
                  %1238 = sbr.rel (%p1236) target = $region132
                $region129: #{self_attn_pallas.1} parent=124 // loop_body
                  %v1242 = vld [vmem:[%s1240] sm:$0xff]
                  %1243 = vst [vmem:[%s1241] sm:$0xff] %v1242
                  %v1244 = vld [vmem:[%s1240 + $0x8] sm:$0xff]
                  %1245 = vst [vmem:[%s1241 + $0x10] sm:$0xff] %v1244
                $region130: #{self_attn_pallas.1} parent=124 // loop_footer
                  %s1239 = sadd.s32 1, %s1235
                $region131: #{self_attn_pallas.1} parent=124 // loop_footer_branch
                  %1234 = sbr.rel target = $region127
                $region132: #{self_attn_pallas.1} parent=124 // loop_exit
                  _
              $region125: #{self_attn_pallas.1} parent=109 // pred_fallthru
                _
              // Predicated region
              $region133: #{self_attn_pallas.1} parent=109 // pred_check
                _
              $region134: #{self_attn_pallas.1} parent=109 // pred_check_branch
                %1247 = sbr.rel target = $region136
              $region135: #{self_attn_pallas.1} parent=109 // pred_region
                _
              $region136: #{self_attn_pallas.1} parent=109 // pred_fallthru
                _
            $region110: #{self_attn_pallas.1} parent=105 // pred_fallthru
              _
            // Predicated region
            $region111: #{self_attn_pallas.1} parent=105 // pred_check
              _
            $region112: #{self_attn_pallas.1} parent=105 // pred_check_branch
              %1217 = sbr.rel target = $region114
            $region113: #{self_attn_pallas.1} parent=105 // pred_region
              %s1219 = ssub.s32 256, 1
              loop: start=0, step=1, limit=1
              $region115: #{self_attn_pallas.1} parent=113 // loop_pre_header
                _
              $region116: #{self_attn_pallas.1} parent=113 // loop_header
                %s1221 = sphi 0, %s1225
                %p1222 = scmp.ge.s32.totalorder %s1221, 1
                %s1226 = sphi %s1199, %s1199
                %s1227 = sphi %s1211, %s1211
              $region117: #{self_attn_pallas.1} parent=113 // loop_header_branch
                %1224 = sbr.rel (%p1222) target = $region121
              $region118: #{self_attn_pallas.1} parent=113 // loop_body
                %v1228 = vld [vmem:[%s1226] sm:%s1219]
                %1229 = vst [vmem:[%s1227] sm:%s1219] %v1228
                %v1230 = vld [vmem:[%s1226 + $0x8] sm:%s1219]
                %1231 = vst [vmem:[%s1227 + $0x10] sm:%s1219] %v1230
              $region119: #{self_attn_pallas.1} parent=113 // loop_footer
                %s1225 = sadd.s32 1, %s1221
              $region120: #{self_attn_pallas.1} parent=113 // loop_footer_branch
                %1220 = sbr.rel target = $region116
              $region121: #{self_attn_pallas.1} parent=113 // loop_exit
                _
            $region114: #{self_attn_pallas.1} parent=105 // pred_fallthru
              _
          $region106: #{self_attn_pallas.1} parent=101 // pred_fallthru
            _
          %1248 = vnop
        $region102: #{self_attn_pallas.1} parent=89 // pred_fallthru
          _
        // Predicated region
        $region137: #{self_attn_pallas.1} parent=89 // pred_check
          %p1249 = pneg %p287
        $region138: #{self_attn_pallas.1} parent=89 // pred_check_branch
          %1251 = sbr.rel (%p1249) target = $region140
        $region139: #{self_attn_pallas.1} parent=89 // pred_region
          %s1252 = smul.u32 16, %s31
          %s1254 = ssub.s32 4096, 4096
          %1255 = vsyncadd %s1201, %s1254
          %s1256 = smul.addr %s1252, 2
          %s1257 = smul.addr %s30, 64
          %s1258 = sadd.s32 %s1256, %s1257
          %s1259 = smul.addr %s1258, 128
          %s1260 = scalar_lea.hbm %s10, %s1259
          %s1261 = sshll.u32 %s1204, 4
          %s1262 = int_to_ptr.vmem [resolvable:$true] %s1261
          %1267 = dma.vmem_to_hbm [thread:$0]  %s1262, 4096, %s1260, %s1201, 256, 256, 16
        $region140: #{self_attn_pallas.1} parent=89 // pred_fallthru
          _
      $region90: #{self_attn_pallas.1} parent=5 // pred_fallthru
        _
      %p1268 = scmp.le.s32.totalorder 2, %s21
      // Predicated region
      $region141: #{self_attn_pallas.1} parent=5 // pred_check
        %p1269 = pneg %p1268
      $region142: #{self_attn_pallas.1} parent=5 // pred_check_branch
        %1271 = sbr.rel (%p1269) target = $region144
      $region143: #{self_attn_pallas.1} parent=5 // pred_region
        %s1272 = ssub.s32 %s21, 2
        // Predicated region
        $region145: #{self_attn_pallas.1} parent=143 // pred_check
          %p1273 = pneg %p265
        $region146: #{self_attn_pallas.1} parent=143 // pred_check_branch
          %1275 = sbr.rel (%p1273) target = $region148
        $region147: #{self_attn_pallas.1} parent=143 // pred_region
          %s1276 = sand.u32 %s250, 1
          %s1277 = sand.u32 %s250, 1
          %s1278 = smul.addr %s1277, 16
          %s1279 = scalar_lea.vmem [#allocation6], %s1278
        $region148: #{self_attn_pallas.1} parent=143 // pred_fallthru
          _
        // Predicated region
        $region149: #{self_attn_pallas.1} parent=143 // pred_check
          %p1280 = pneg %p293
        $region150: #{self_attn_pallas.1} parent=143 // pred_check_branch
          %1282 = sbr.rel (%p1280) target = $region152
        $region151: #{self_attn_pallas.1} parent=143 // pred_region
          %s1283 = sand.u32 %s278, 1
          %s1284 = scalar_lea.sflag [#allocation8], %s1283
          %s1285 = sand.u32 %s278, 1
          %s1286 = smul.addr %s1285, 256
          %s1287 = scalar_lea.vmem [#allocation7], %s1286
          %1288 = dma.done %s1284, 4096
        $region152: #{self_attn_pallas.1} parent=143 // pred_fallthru
          _
      $region144: #{self_attn_pallas.1} parent=5 // pred_fallthru
        _
    $region6: #{self_attn_pallas.1} parent=1 // loop_footer
      %s25 = sadd.s32 1, %s21
    $region7: #{self_attn_pallas.1} parent=1 // loop_footer_branch
      %20 = sbr.rel target = $region3
    $region8: #{self_attn_pallas.1} parent=1 // loop_exit
      _
    %1289 = vsyncpa [#allocation8], 1
    %s1290 = scalar_lea.sflag [#allocation8], 1
    %1291 = vsyncpa %s1290, 1

</llo_original>
